<compile_context>
chip_gen: v6e
topology: v6e:2x2x1
jax: 0.10.0
libtpu: 0.0.40
codegen_flags: <defaults>
</compile_context>

<pallas_src>
import functools

import jax
import jax.numpy as jnp
from jax.experimental import pallas as pl
from jax.experimental.pallas import tpu as pltpu

# Tile sizes: feature tile = TH*LANE*4B = 128 KiB (x2 double-buffered), acc and
# output tiles 64 KiB each -> comfortably inside every generation's scoped VMEM.
TN = 128      # target points per grid step (sublane-aligned)
TH = 256      # octree nodes (reduction axis) per grid step
LANE = 128    # channels padded to a lane-dense multiple of 128


def _trilinear_kernel(idx_ref, w_ref, feat_ref, o_ref, acc_ref):
    """One (point-tile, node-tile) grid step.

    idx_ref:  (TN, 8)  int32  global node index of each corner, -1 if missing
    w_ref:    (TN, 8)  f32    trilinear weight of each corner, 0.0 if missing
    feat_ref: (TH, Cp) f32    rows [k*TH, (k+1)*TH) of the (H, C) feature table
    o_ref:    (TN, Cp) f32    interpolated output
    acc_ref:  (TN, Cp) f32    VMEM accumulator, resident across the node axis
    """
    k = pl.program_id(1)

    @pl.when(k == 0)
    def _():
        acc_ref[...] = jnp.zeros_like(acc_ref)

    tn = idx_ref.shape[0]
    th = feat_ref.shape[0]

    idx = idx_ref[...]                      # (TN, 8)
    w = w_ref[...]                          # (TN, 8)

    # Dense (TN, TH) slice of the sparse interpolation matrix for this node tile.
    row_ids = jax.lax.broadcasted_iota(jnp.int32, (tn, th), 1) + k * th
    wmat = jnp.zeros((tn, th), jnp.float32)
    for c in range(8):                      # static unroll over the 8 corners
        hit = idx[:, c:c + 1] == row_ids    # (TN, TH)
        wmat = wmat + jnp.where(hit, w[:, c:c + 1], 0.0)

    # MXU contraction: (TN, TH) @ (TH, Cp), accumulate across node tiles.
    acc_ref[...] += jnp.dot(wmat, feat_ref[...],
                            preferred_element_type=jnp.float32)

    @pl.when(k == pl.num_programs(1) - 1)
    def _():
        # Row-sum of the sparse matrix == sum of found-corner weights.
        norm = jnp.sum(w, axis=1, keepdims=True)           # (TN, 1)
        o_ref[...] = (acc_ref[...] / (norm + 1e-10)).astype(o_ref.dtype)


def _corner_setup(node_xyz_target, node_xyz_depth, depth, target_depth):
    """Plain-JAX octree bookkeeping: for each target point, the storage index
    and trilinear weight of each of its 8 corner nodes at `depth`
    (idx = -1 / w = 0 if that corner does not exist in the octree)."""
    # TODO(synk): ocnn packs (x, y, z, id) int16 fields into a 64-bit key and
    # calls the octree_search_key CUDA op; here we pack into an int32 composite
    # key (valid while 3*depth + id bits <= 31) and use jnp.searchsorted over
    # the sorted node keys instead.
    scale = 2.0 ** (depth - target_depth)
    xyz = node_xyz_target.astype(jnp.float32)
    xyz = (xyz + jnp.array([0.5, 0.5, 0.5, 0.0], jnp.float32)) * \
          jnp.array([scale, scale, scale, 1.0], jnp.float32)
    xyzf = xyz[:, :3] - 0.5
    xyzi = jnp.floor(xyzf)
    frac = xyzf - xyzi                                               # (N, 3)

    corner = jnp.array(
        [[0, 0, 0], [0, 0, 1], [0, 1, 0], [0, 1, 1],
         [1, 0, 0], [1, 0, 1], [1, 1, 0], [1, 1, 1]], jnp.float32)   # `mask`
    # |prod(maskc - frac)| -> the trilinear weights of the original code.
    w = jnp.abs(jnp.prod((1.0 - corner)[None] - frac[:, None, :], axis=2))   # (N, 8)

    cxyz = (xyzi[:, None, :] + corner[None]).astype(jnp.int32)       # (N, 8, 3)
    cid = xyz[:, 3].astype(jnp.int32)                                # (N,)
    bound = 2 ** depth
    in_range = jnp.all((cxyz >= 0) & (cxyz < bound), axis=2)         # (N, 8)

    def pack(x, y, z, i):
        return ((i * bound + x) * bound + y) * bound + z

    q_key = pack(cxyz[..., 0], cxyz[..., 1], cxyz[..., 2],
                 jnp.broadcast_to(cid[:, None], cxyz.shape[:2]))     # (N, 8)
    node = node_xyz_depth.astype(jnp.int32)
    n_key = pack(node[:, 0], node[:, 1], node[:, 2], node[:, 3])     # (H,)

    order = jnp.argsort(n_key)
    sorted_key = n_key[order]
    pos = jnp.clip(jnp.searchsorted(sorted_key, q_key), 0, n_key.shape[0] - 1)
    found = in_range & (sorted_key[pos] == q_key)
    idx = jnp.where(found, order[pos], -1).astype(jnp.int32)
    w = jnp.where(found, w, 0.0).astype(jnp.float32)
    return idx, w


@functools.partial(jax.jit, static_argnames=("depth",))
def octree_trilinear(data, node_xyz_depth, node_xyz_target, depth):
    """Pallas port of ocnn OctreeTrilinear.forward.

    data:            (1, C, H, 1)  features of the octree nodes at `depth`.
    node_xyz_depth:  (H, 4) int    (x, y, z, id) of those nodes, in data's
                                   storage order (decoded octree keys).
    node_xyz_target: (N, 4) int    (x, y, z, id) of the nodes at depth + 1
                                   (the points being interpolated).
    Returns (1, C, N, 1), matching the PyTorch module.
    """
    target_depth = depth + 1
    c = data.shape[1]
    h = data.shape[2]
    n = node_xyz_target.shape[0]

    # (H, C) feature table: channels on the 128-lane axis (one-time transpose).
    feat = jnp.transpose(data[0, :, :, 0], (1, 0)).astype(jnp.float32)

    idx, w = _corner_setup(node_xyz_target, node_xyz_depth, depth, target_depth)

    # Pad to tile multiples (padded points carry w=0 so they contribute nothing,
    # padded feature rows are never selected, padded channels are sliced off).
    c_pad = pl.cdiv(c, LANE) * LANE
    h_pad = pl.cdiv(h, TH) * TH
    n_pad = pl.cdiv(n, TN) * TN
    feat_p = jnp.pad(feat, ((0, h_pad - h), (0, c_pad - c)))
    idx_p = jnp.pad(idx, ((0, n_pad - n), (0, 0)), constant_values=-1)
    w_p = jnp.pad(w, ((0, n_pad - n), (0, 0)))

    grid = (n_pad // TN, h_pad // TH)     # (point tiles, node tiles=reduction)
    out = pl.pallas_call(
        _trilinear_kernel,
        out_shape=jax.ShapeDtypeStruct((n_pad, c_pad), jnp.float32),
        grid_spec=pltpu.PrefetchScalarGridSpec(
            num_scalar_prefetch=0,
            grid=grid,
            in_specs=[
                pl.BlockSpec((TN, 8), lambda i, k: (i, 0)),       # corner idx
                pl.BlockSpec((TN, 8), lambda i, k: (i, 0)),       # corner weights
                pl.BlockSpec((TH, c_pad), lambda i, k: (k, 0)),   # features
            ],
            out_specs=pl.BlockSpec((TN, c_pad), lambda i, k: (i, 0)),
            scratch_shapes=[pltpu.VMEM((TN, c_pad), jnp.float32)],
        ),
        compiler_params=pltpu.CompilerParams(
            dimension_semantics=("parallel", "arbitrary")),
    )(idx_p, w_p, feat_p)

    out = out[:n, :c]
    return jnp.transpose(out)[None, :, :, None]      # (1, C, N, 1)


def _reference(data, node_xyz_depth, node_xyz_target, depth):
    """Independent plain-JAX reference (brute-force key match + f32 gather)."""
    target_depth = depth + 1
    feat = jnp.transpose(data[0, :, :, 0], (1, 0)).astype(jnp.float32)  # (H, C)
    scale = 2.0 ** (depth - target_depth)
    xyz = node_xyz_target.astype(jnp.float32)
    xyz = (xyz + jnp.array([0.5, 0.5, 0.5, 0.0], jnp.float32)) * \
          jnp.array([scale, scale, scale, 1.0], jnp.float32)
    xyzf = xyz[:, :3] - 0.5
    xyzi = jnp.floor(xyzf)
    frac = xyzf - xyzi
    corner = jnp.array(
        [[0, 0, 0], [0, 0, 1], [0, 1, 0], [0, 1, 1],
         [1, 0, 0], [1, 0, 1], [1, 1, 0], [1, 1, 1]], jnp.float32)
    w = jnp.abs(jnp.prod((1.0 - corner)[None] - frac[:, None, :], axis=2))   # (N, 8)
    cxyz = (xyzi[:, None, :] + corner[None]).astype(jnp.int32)               # (N, 8, 3)
    cid = xyz[:, 3].astype(jnp.int32)
    node = node_xyz_depth.astype(jnp.int32)
    eq = ((cxyz[:, :, None, 0] == node[None, None, :, 0]) &
          (cxyz[:, :, None, 1] == node[None, None, :, 1]) &
          (cxyz[:, :, None, 2] == node[None, None, :, 2]) &
          (cid[:, None, None] == node[None, None, :, 3]))                    # (N, 8, H)
    found = jnp.any(eq, axis=2)
    w = jnp.where(found, w, 0.0)
    idx = jnp.argmax(eq, axis=2)                                             # (N, 8)
    gathered = feat[idx]                                                     # (N, 8, C)
    out = jnp.sum(w[:, :, None] * gathered, axis=1)                          # (N, C)
    norm = jnp.sum(w, axis=1, keepdims=True)
    out = out / (norm + 1e-10)
    return jnp.transpose(out)[None, :, :, None]


if __name__ == "__main__":
    depth = 3                      # `data` lives at depth 3 -> 8^3 grid
    C = 32                         # feature channels
    g = 2 ** depth

    key = jax.random.PRNGKey(0)
    k_feat, k_pts, k_perm = jax.random.split(key, 3)

    # A complete octree level at `depth`: all 8^3 nodes, batch id 0, stored in a
    # shuffled order (emulating ocnn's shuffled-key storage order).
    xs, ys, zs = jnp.meshgrid(jnp.arange(g), jnp.arange(g), jnp.arange(g),
                              indexing="ij")
    node_xyz_depth = jnp.stack(
        [xs.reshape(-1), ys.reshape(-1), zs.reshape(-1),
         jnp.zeros((g ** 3,), jnp.int32)], axis=1).astype(jnp.int32)
    node_xyz_depth = node_xyz_depth[jax.random.permutation(k_perm, g ** 3)]
    H = node_xyz_depth.shape[0]                            # 512

    # Node features at `depth`; rounded to bf16-representable values so the
    # check is independent of the MXU's f32 pass configuration.
    data = jax.random.normal(k_feat, (1, C, H, 1), dtype=jnp.float32)
    data = data.astype(jnp.bfloat16).astype(jnp.float32)

    # Target nodes at depth + 1 (the points being interpolated), batch id 0.
    N = 96
    tgt = jax.random.randint(k_pts, (N, 3), 0, 2 ** (depth + 1))
    node_xyz_target = jnp.concatenate(
        [tgt, jnp.zeros((N, 1), tgt.dtype)], axis=1).astype(jnp.int32)

    out = octree_trilinear(data, node_xyz_depth, node_xyz_target, depth)
    out = jax.block_until_ready(out)

    ref = _reference(data, node_xyz_depth, node_xyz_target, depth)
    assert out.shape == (1, C, N, 1)
    max_err = float(jnp.max(jnp.abs(out - ref)))
    assert jnp.allclose(out, ref, atol=1e-4, rtol=1e-4), f"max abs err {max_err}"
    print("KERNEL_OK")
</pallas_src>

<mosaic_0001>
module attributes {stable_mosaic.version = 11 : i64} {
  func.func @_trilinear_kernel(%arg0: i32, %arg1: i32, %arg2: memref<128x8xi32, #tpu.memory_space<vmem>>, %arg3: memref<128x8xf32, #tpu.memory_space<vmem>>, %arg4: memref<256x128xf32, #tpu.memory_space<vmem>>, %arg5: memref<128x128xf32, #tpu.memory_space<vmem>>, %arg6: memref<128x128xf32, #tpu.memory_space<vmem>>) attributes {dimension_semantics = [#tpu.dimension_semantics<parallel>, #tpu.dimension_semantics<arbitrary>], iteration_bounds = array<i64: 1, 2>, scalar_prefetch = 0 : i64, scratch_operands = 1 : i64, tpu.core_type = #tpu.core_type<tc>, window_params = [{transform_indices = @transform_0, window_bounds = array<i64: 128, 8>}, {transform_indices = @transform_1, window_bounds = array<i64: 128, 8>}, {transform_indices = @transform_2, window_bounds = array<i64: 256, 128>}, {transform_indices = @transform_3, window_bounds = array<i64: 128, 128>}]} {
    %c0_i32 = arith.constant 0 : i32
    %0 = arith.cmpi eq, %arg1, %c0_i32 : i32
    %1 = arith.extui %0 : i1 to i32
    %c0_i32_0 = arith.constant 0 : i32
    %2 = arith.cmpi ne, %1, %c0_i32_0 : i32
    scf.if %2 {
      %cst_20 = arith.constant 0.000000e+00 : f32
      %90 = vector.broadcast %cst_20 : f32 to vector<128x128xf32>
      %c0_21 = arith.constant 0 : index
      %c0_22 = arith.constant 0 : index
      %91 = vector.load %arg6[%c0_21, %c0_22] : memref<128x128xf32, #tpu.memory_space<vmem>>, vector<128x128xf32>
      tpu.vector_store %arg6[%c0_21, %c0_22], %90 {strides = array<i32>} : memref<128x128xf32, #tpu.memory_space<vmem>>, vector<128x128xf32>,
    } else {
    }
    %c0 = arith.constant 0 : index
    %c0_1 = arith.constant 0 : index
    %3 = vector.load %arg2[%c0, %c0_1] : memref<128x8xi32, #tpu.memory_space<vmem>>, vector<128x8xi32>
    %c0_2 = arith.constant 0 : index
    %c0_3 = arith.constant 0 : index
    %4 = vector.load %arg3[%c0_2, %c0_3] : memref<128x8xf32, #tpu.memory_space<vmem>>, vector<128x8xf32>
    %5 = tpu.iota {dimensions = array<i32: 1>} : vector<128x256xi32>
    %c256_i32 = arith.constant 256 : i32
    %6 = arith.muli %arg1, %c256_i32 : i32
    %7 = vector.broadcast %6 : i32 to vector<128x256xi32>
    %8 = arith.addi %5, %7 : vector<128x256xi32>
    %cst = arith.constant 0.000000e+00 : f32
    %9 = vector.broadcast %cst : f32 to vector<128x256xf32>
    %10 = vector.extract_strided_slice %3 {offsets = [0, 0], sizes = [128, 1], strides = [1, 1]} : vector<128x8xi32> to vector<128x1xi32>
    %11 = vector.broadcast %10 : vector<128x1xi32> to vector<128x256xi32>
    %12 = arith.cmpi eq, %11, %8 : vector<128x256xi32>
    %13 = vector.extract_strided_slice %4 {offsets = [0, 0], sizes = [128, 1], strides = [1, 1]} : vector<128x8xf32> to vector<128x1xf32>
    %cst_4 = arith.constant 0.000000e+00 : f32
    %14 = vector.shape_cast %13 : vector<128x1xf32> to vector<128x1xf32>
    %15 = vector.broadcast %14 : vector<128x1xf32> to vector<128x256xf32>
    %16 = vector.broadcast %cst_4 : f32 to vector<128x256xf32>
    %17 = arith.select %12, %15, %16 : vector<128x256xi1>, vector<128x256xf32>
    %18 = arith.addf %9, %17 : vector<128x256xf32>
    %19 = vector.extract_strided_slice %3 {offsets = [0, 1], sizes = [128, 1], strides = [1, 1]} : vector<128x8xi32> to vector<128x1xi32>
    %20 = vector.broadcast %19 : vector<128x1xi32> to vector<128x256xi32>
    %21 = arith.cmpi eq, %20, %8 : vector<128x256xi32>
    %22 = vector.extract_strided_slice %4 {offsets = [0, 1], sizes = [128, 1], strides = [1, 1]} : vector<128x8xf32> to vector<128x1xf32>
    %cst_5 = arith.constant 0.000000e+00 : f32
    %23 = vector.shape_cast %22 : vector<128x1xf32> to vector<128x1xf32>
    %24 = vector.broadcast %23 : vector<128x1xf32> to vector<128x256xf32>
    %25 = vector.broadcast %cst_5 : f32 to vector<128x256xf32>
    %26 = arith.select %21, %24, %25 : vector<128x256xi1>, vector<128x256xf32>
    %27 = arith.addf %18, %26 : vector<128x256xf32>
    %28 = vector.extract_strided_slice %3 {offsets = [0, 2], sizes = [128, 1], strides = [1, 1]} : vector<128x8xi32> to vector<128x1xi32>
    %29 = vector.broadcast %28 : vector<128x1xi32> to vector<128x256xi32>
    %30 = arith.cmpi eq, %29, %8 : vector<128x256xi32>
    %31 = vector.extract_strided_slice %4 {offsets = [0, 2], sizes = [128, 1], strides = [1, 1]} : vector<128x8xf32> to vector<128x1xf32>
    %cst_6 = arith.constant 0.000000e+00 : f32
    %32 = vector.shape_cast %31 : vector<128x1xf32> to vector<128x1xf32>
    %33 = vector.broadcast %32 : vector<128x1xf32> to vector<128x256xf32>
    %34 = vector.broadcast %cst_6 : f32 to vector<128x256xf32>
    %35 = arith.select %30, %33, %34 : vector<128x256xi1>, vector<128x256xf32>
    %36 = arith.addf %27, %35 : vector<128x256xf32>
    %37 = vector.extract_strided_slice %3 {offsets = [0, 3], sizes = [128, 1], strides = [1, 1]} : vector<128x8xi32> to vector<128x1xi32>
    %38 = vector.broadcast %37 : vector<128x1xi32> to vector<128x256xi32>
    %39 = arith.cmpi eq, %38, %8 : vector<128x256xi32>
    %40 = vector.extract_strided_slice %4 {offsets = [0, 3], sizes = [128, 1], strides = [1, 1]} : vector<128x8xf32> to vector<128x1xf32>
    %cst_7 = arith.constant 0.000000e+00 : f32
    %41 = vector.shape_cast %40 : vector<128x1xf32> to vector<128x1xf32>
    %42 = vector.broadcast %41 : vector<128x1xf32> to vector<128x256xf32>
    %43 = vector.broadcast %cst_7 : f32 to vector<128x256xf32>
    %44 = arith.select %39, %42, %43 : vector<128x256xi1>, vector<128x256xf32>
    %45 = arith.addf %36, %44 : vector<128x256xf32>
    %46 = vector.extract_strided_slice %3 {offsets = [0, 4], sizes = [128, 1], strides = [1, 1]} : vector<128x8xi32> to vector<128x1xi32>
    %47 = vector.broadcast %46 : vector<128x1xi32> to vector<128x256xi32>
    %48 = arith.cmpi eq, %47, %8 : vector<128x256xi32>
    %49 = vector.extract_strided_slice %4 {offsets = [0, 4], sizes = [128, 1], strides = [1, 1]} : vector<128x8xf32> to vector<128x1xf32>
    %cst_8 = arith.constant 0.000000e+00 : f32
    %50 = vector.shape_cast %49 : vector<128x1xf32> to vector<128x1xf32>
    %51 = vector.broadcast %50 : vector<128x1xf32> to vector<128x256xf32>
    %52 = vector.broadcast %cst_8 : f32 to vector<128x256xf32>
    %53 = arith.select %48, %51, %52 : vector<128x256xi1>, vector<128x256xf32>
    %54 = arith.addf %45, %53 : vector<128x256xf32>
    %55 = vector.extract_strided_slice %3 {offsets = [0, 5], sizes = [128, 1], strides = [1, 1]} : vector<128x8xi32> to vector<128x1xi32>
    %56 = vector.broadcast %55 : vector<128x1xi32> to vector<128x256xi32>
    %57 = arith.cmpi eq, %56, %8 : vector<128x256xi32>
    %58 = vector.extract_strided_slice %4 {offsets = [0, 5], sizes = [128, 1], strides = [1, 1]} : vector<128x8xf32> to vector<128x1xf32>
    %cst_9 = arith.constant 0.000000e+00 : f32
    %59 = vector.shape_cast %58 : vector<128x1xf32> to vector<128x1xf32>
    %60 = vector.broadcast %59 : vector<128x1xf32> to vector<128x256xf32>
    %61 = vector.broadcast %cst_9 : f32 to vector<128x256xf32>
    %62 = arith.select %57, %60, %61 : vector<128x256xi1>, vector<128x256xf32>
    %63 = arith.addf %54, %62 : vector<128x256xf32>
    %64 = vector.extract_strided_slice %3 {offsets = [0, 6], sizes = [128, 1], strides = [1, 1]} : vector<128x8xi32> to vector<128x1xi32>
    %65 = vector.broadcast %64 : vector<128x1xi32> to vector<128x256xi32>
    %66 = arith.cmpi eq, %65, %8 : vector<128x256xi32>
    %67 = vector.extract_strided_slice %4 {offsets = [0, 6], sizes = [128, 1], strides = [1, 1]} : vector<128x8xf32> to vector<128x1xf32>
    %cst_10 = arith.constant 0.000000e+00 : f32
    %68 = vector.shape_cast %67 : vector<128x1xf32> to vector<128x1xf32>
    %69 = vector.broadcast %68 : vector<128x1xf32> to vector<128x256xf32>
    %70 = vector.broadcast %cst_10 : f32 to vector<128x256xf32>
    %71 = arith.select %66, %69, %70 : vector<128x256xi1>, vector<128x256xf32>
    %72 = arith.addf %63, %71 : vector<128x256xf32>
    %73 = vector.extract_strided_slice %3 {offsets = [0, 7], sizes = [128, 1], strides = [1, 1]} : vector<128x8xi32> to vector<128x1xi32>
    %74 = vector.broadcast %73 : vector<128x1xi32> to vector<128x256xi32>
    %75 = arith.cmpi eq, %74, %8 : vector<128x256xi32>
    %76 = vector.extract_strided_slice %4 {offsets = [0, 7], sizes = [128, 1], strides = [1, 1]} : vector<128x8xf32> to vector<128x1xf32>
    %cst_11 = arith.constant 0.000000e+00 : f32
    %77 = vector.shape_cast %76 : vector<128x1xf32> to vector<128x1xf32>
    %78 = vector.broadcast %77 : vector<128x1xf32> to vector<128x256xf32>
    %79 = vector.broadcast %cst_11 : f32 to vector<128x256xf32>
    %80 = arith.select %75, %78, %79 : vector<128x256xi1>, vector<128x256xf32>
    %81 = arith.addf %72, %80 : vector<128x256xf32>
    %c0_12 = arith.constant 0 : index
    %c0_13 = arith.constant 0 : index
    %82 = vector.load %arg6[%c0_12, %c0_13] : memref<128x128xf32, #tpu.memory_space<vmem>>, vector<128x128xf32>
    %c0_14 = arith.constant 0 : index
    %c0_15 = arith.constant 0 : index
    %83 = vector.load %arg4[%c0_14, %c0_15] : memref<256x128xf32, #tpu.memory_space<vmem>>, vector<256x128xf32>
    %cst_16 = arith.constant dense<0.000000e+00> : vector<128x128xf32>
    %84 = tpu.matmul %81, %83, %cst_16 {dimension_numbers = #tpu.dot_dimension_numbers<[1], [0], [0], [1], [0, 0, 1, 1], [], []>} : vector<128x256xf32>, vector<256x128xf32>, vector<128x128xf32> -> vector<128x128xf32>
    %85 = arith.addf %82, %84 : vector<128x128xf32>
    %c0_17 = arith.constant 0 : index
    %c0_18 = arith.constant 0 : index
    %86 = vector.load %arg6[%c0_17, %c0_18] : memref<128x128xf32, #tpu.memory_space<vmem>>, vector<128x128xf32>
    tpu.vector_store %arg6[%c0_17, %c0_18], %85 {strides = array<i32>} : memref<128x128xf32, #tpu.memory_space<vmem>>, vector<128x128xf32>,
    %c1_i32 = arith.constant 1 : i32
    %87 = arith.cmpi eq, %arg1, %c1_i32 : i32
    %88 = arith.extui %87 : i1 to i32
    %c0_i32_19 = arith.constant 0 : i32
    %89 = arith.cmpi ne, %88, %c0_i32_19 : i32
    scf.if %89 {
      %cst_20 = arith.constant dense<0.000000e+00> : vector<128xf32>
      %90 = vector.multi_reduction <add>, %4, %cst_20 [1] : vector<128x8xf32> to vector<128xf32>
      %91 = vector.shape_cast %90 : vector<128xf32> to vector<128x1xf32>
      %c0_21 = arith.constant 0 : index
      %c0_22 = arith.constant 0 : index
      %92 = vector.load %arg6[%c0_21, %c0_22] : memref<128x128xf32, #tpu.memory_space<vmem>>, vector<128x128xf32>
      %cst_23 = arith.constant 1.000000e-10 : f32
      %93 = vector.broadcast %cst_23 : f32 to vector<128x1xf32>
      %94 = arith.addf %91, %93 : vector<128x1xf32>
      %95 = vector.broadcast %94 : vector<128x1xf32> to vector<128x128xf32>
      %96 = arith.divf %92, %95 : vector<128x128xf32>
      %c0_24 = arith.constant 0 : index
      %c0_25 = arith.constant 0 : index
      %97 = vector.load %arg5[%c0_24, %c0_25] : memref<128x128xf32, #tpu.memory_space<vmem>>, vector<128x128xf32>
      tpu.vector_store %arg5[%c0_24, %c0_25], %96 {strides = array<i32>} : memref<128x128xf32, #tpu.memory_space<vmem>>, vector<128x128xf32>,
    } else {
    }
    return
  }
  func.func @transform_0(%arg0: i32, %arg1: i32) -> (i32, i32) {
    %c0_i32 = arith.constant 0 : i32
    %c0_i32_0 = arith.constant 0 : i32
    return %arg0, %c0_i32 : i32, i32
  }
  func.func @transform_1(%arg0: i32, %arg1: i32) -> (i32, i32) {
    %c0_i32 = arith.constant 0 : i32
    %c0_i32_0 = arith.constant 0 : i32
    return %arg0, %c0_i32 : i32, i32
  }
  func.func @transform_2(%arg0: i32, %arg1: i32) -> (i32, i32) {
    %c0_i32 = arith.constant 0 : i32
    %c0_i32_0 = arith.constant 0 : i32
    return %arg1, %c0_i32 : i32, i32
  }
  func.func @transform_3(%arg0: i32, %arg1: i32) -> (i32, i32) {
    %c0_i32 = arith.constant 0 : i32
    %c0_i32_0 = arith.constant 0 : i32
    return %arg0, %c0_i32 : i32, i32
  }
}

</mosaic_0001>

<llo_original>
// kernel: custom-call.1
$region0: #{custom-call.1}
  %s0 = inlined_call_operand.vmem [shape: u32[96,8], index: 0, kind: output, shape index: {}]

// kernel: squeeze.6
$region0: #{squeeze.6}
  %s0 = inlined_call_operand.vmem [shape: s32[768], index: 0, kind: input, shape index: {}]
  %s1 = inlined_call_operand.vmem [shape: s32[96,8], index: 1, kind: output, shape index: {}]
  %v2 = vld [vmem:[%s0] sm:$0x3f]
  %vm3 = vcmask 64512
  %4 = vst.msk [vmem:[%s1] ss:$16 sm:$0x3] %vm3, %v2
  %5 = vst.msk [vmem:[%s1] ss:$16 sm:$0xc] %vm3, %v2
  %6 = vst.msk [vmem:[%s1] ss:$16 sm:$0x30] %vm3, %v2
  %v7 = vld [vmem:[%s0] sm:$0x3f]
  %8 = vrot.lane.b32.xlu0 %v7, 120
  %v9 = vpop.permute.xlu0 %8
  %vm10 = vcmask 64512
  %s11 = scalar_lea.vmem %s1, 1
  %12 = vst.msk [vmem:[%s11] ss:$16 sm:$0x3] %vm10, %v9
  %s13 = scalar_lea.vmem %s1, 1
  %14 = vst.msk [vmem:[%s13] ss:$16 sm:$0xc] %vm10, %v9
  %s15 = scalar_lea.vmem %s1, 1
  %16 = vst.msk [vmem:[%s15] ss:$16 sm:$0x30] %vm10, %v9
  %v17 = vld [vmem:[%s0] sm:$0x3f]
  %18 = vrot.lane.b32.xlu0 %v17, 112
  %v19 = vpop.permute.xlu0 %18
  %vm20 = vcmask 64512
  %s21 = scalar_lea.vmem %s1, 2
  %22 = vst.msk [vmem:[%s21] ss:$16 sm:$0x3] %vm20, %v19
  %s23 = scalar_lea.vmem %s1, 2
  %24 = vst.msk [vmem:[%s23] ss:$16 sm:$0xc] %vm20, %v19
  %s25 = scalar_lea.vmem %s1, 2
  %26 = vst.msk [vmem:[%s25] ss:$16 sm:$0x30] %vm20, %v19
  %v27 = vld [vmem:[%s0] sm:$0x3f]
  %28 = vrot.lane.b32.xlu0 %v27, 104
  %v29 = vpop.permute.xlu0 %28
  %vm30 = vcmask 64512
  %s31 = scalar_lea.vmem %s1, 3
  %32 = vst.msk [vmem:[%s31] ss:$16 sm:$0x3] %vm30, %v29
  %s33 = scalar_lea.vmem %s1, 3
  %34 = vst.msk [vmem:[%s33] ss:$16 sm:$0xc] %vm30, %v29
  %s35 = scalar_lea.vmem %s1, 3
  %36 = vst.msk [vmem:[%s35] ss:$16 sm:$0x30] %vm30, %v29
  %v37 = vld [vmem:[%s0] sm:$0x3f]
  %38 = vrot.lane.b32.xlu0 %v37, 96
  %v39 = vpop.permute.xlu0 %38
  %vm40 = vcmask 64512
  %s41 = scalar_lea.vmem %s1, 4
  %42 = vst.msk [vmem:[%s41] ss:$16 sm:$0x3] %vm40, %v39
  %s43 = scalar_lea.vmem %s1, 4
  %44 = vst.msk [vmem:[%s43] ss:$16 sm:$0xc] %vm40, %v39
  %s45 = scalar_lea.vmem %s1, 4
  %46 = vst.msk [vmem:[%s45] ss:$16 sm:$0x30] %vm40, %v39
  %v47 = vld [vmem:[%s0] sm:$0x3f]
  %48 = vrot.lane.b32.xlu0 %v47, 88
  %v49 = vpop.permute.xlu0 %48
  %vm50 = vcmask 64512
  %s51 = scalar_lea.vmem %s1, 5
  %52 = vst.msk [vmem:[%s51] ss:$16 sm:$0x3] %vm50, %v49
  %s53 = scalar_lea.vmem %s1, 5
  %54 = vst.msk [vmem:[%s53] ss:$16 sm:$0xc] %vm50, %v49
  %s55 = scalar_lea.vmem %s1, 5
  %56 = vst.msk [vmem:[%s55] ss:$16 sm:$0x30] %vm50, %v49
  %v57 = vld [vmem:[%s0] sm:$0x3f]
  %58 = vrot.lane.b32.xlu0 %v57, 80
  %v59 = vpop.permute.xlu0 %58
  %vm60 = vcmask 64512
  %s61 = scalar_lea.vmem %s1, 6
  %62 = vst.msk [vmem:[%s61] ss:$16 sm:$0x3] %vm60, %v59
  %s63 = scalar_lea.vmem %s1, 6
  %64 = vst.msk [vmem:[%s63] ss:$16 sm:$0xc] %vm60, %v59
  %s65 = scalar_lea.vmem %s1, 6
  %66 = vst.msk [vmem:[%s65] ss:$16 sm:$0x30] %vm60, %v59
  %v67 = vld [vmem:[%s0] sm:$0x3f]
  %68 = vrot.lane.b32.xlu0 %v67, 72
  %v69 = vpop.permute.xlu0 %68
  %vm70 = vcmask 64512
  %s71 = scalar_lea.vmem %s1, 7
  %72 = vst.msk [vmem:[%s71] ss:$16 sm:$0x3] %vm70, %v69
  %s73 = scalar_lea.vmem %s1, 7
  %74 = vst.msk [vmem:[%s73] ss:$16 sm:$0xc] %vm70, %v69
  %s75 = scalar_lea.vmem %s1, 7
  %76 = vst.msk [vmem:[%s75] ss:$16 sm:$0x30] %vm70, %v69
  %v77 = vld [vmem:[%s0] sm:$0x3f]
  %78 = vrot.lane.b32.xlu0 %v77, 64
  %v79 = vpop.permute.xlu0 %78
  %vm80 = vcmask 64512
  %s81 = scalar_lea.vmem %s1, 8
  %82 = vst.msk [vmem:[%s81] ss:$16 sm:$0x3] %vm80, %v79
  %s83 = scalar_lea.vmem %s1, 8
  %84 = vst.msk [vmem:[%s83] ss:$16 sm:$0xc] %vm80, %v79
  %s85 = scalar_lea.vmem %s1, 8
  %86 = vst.msk [vmem:[%s85] ss:$16 sm:$0x30] %vm80, %v79
  %v87 = vld [vmem:[%s0] sm:$0x3f]
  %88 = vrot.lane.b32.xlu0 %v87, 56
  %v89 = vpop.permute.xlu0 %88
  %vm90 = vcmask 64512
  %s91 = scalar_lea.vmem %s1, 9
  %92 = vst.msk [vmem:[%s91] ss:$16 sm:$0x3] %vm90, %v89
  %s93 = scalar_lea.vmem %s1, 9
  %94 = vst.msk [vmem:[%s93] ss:$16 sm:$0xc] %vm90, %v89
  %s95 = scalar_lea.vmem %s1, 9
  %96 = vst.msk [vmem:[%s95] ss:$16 sm:$0x30] %vm90, %v89
  %v97 = vld [vmem:[%s0] sm:$0x3f]
  %98 = vrot.lane.b32.xlu0 %v97, 48
  %v99 = vpop.permute.xlu0 %98
  %vm100 = vcmask 64512
  %s101 = scalar_lea.vmem %s1, 10
  %102 = vst.msk [vmem:[%s101] ss:$16 sm:$0x3] %vm100, %v99
  %s103 = scalar_lea.vmem %s1, 10
  %104 = vst.msk [vmem:[%s103] ss:$16 sm:$0xc] %vm100, %v99
  %s105 = scalar_lea.vmem %s1, 10
  %106 = vst.msk [vmem:[%s105] ss:$16 sm:$0x30] %vm100, %v99
  %v107 = vld [vmem:[%s0] sm:$0x3f]
  %108 = vrot.lane.b32.xlu0 %v107, 40
  %v109 = vpop.permute.xlu0 %108
  %vm110 = vcmask 64512
  %s111 = scalar_lea.vmem %s1, 11
  %112 = vst.msk [vmem:[%s111] ss:$16 sm:$0x3] %vm110, %v109
  %s113 = scalar_lea.vmem %s1, 11
  %114 = vst.msk [vmem:[%s113] ss:$16 sm:$0xc] %vm110, %v109
  %s115 = scalar_lea.vmem %s1, 11
  %116 = vst.msk [vmem:[%s115] ss:$16 sm:$0x30] %vm110, %v109
  %v117 = vld [vmem:[%s0] sm:$0x3f]
  %118 = vrot.lane.b32.xlu0 %v117, 32
  %v119 = vpop.permute.xlu0 %118
  %vm120 = vcmask 64512
  %s121 = scalar_lea.vmem %s1, 12
  %122 = vst.msk [vmem:[%s121] ss:$16 sm:$0x3] %vm120, %v119
  %s123 = scalar_lea.vmem %s1, 12
  %124 = vst.msk [vmem:[%s123] ss:$16 sm:$0xc] %vm120, %v119
  %s125 = scalar_lea.vmem %s1, 12
  %126 = vst.msk [vmem:[%s125] ss:$16 sm:$0x30] %vm120, %v119
  %v127 = vld [vmem:[%s0] sm:$0x3f]
  %128 = vrot.lane.b32.xlu0 %v127, 24
  %v129 = vpop.permute.xlu0 %128
  %vm130 = vcmask 64512
  %s131 = scalar_lea.vmem %s1, 13
  %132 = vst.msk [vmem:[%s131] ss:$16 sm:$0x3] %vm130, %v129
  %s133 = scalar_lea.vmem %s1, 13
  %134 = vst.msk [vmem:[%s133] ss:$16 sm:$0xc] %vm130, %v129
  %s135 = scalar_lea.vmem %s1, 13
  %136 = vst.msk [vmem:[%s135] ss:$16 sm:$0x30] %vm130, %v129
  %v137 = vld [vmem:[%s0] sm:$0x3f]
  %138 = vrot.lane.b32.xlu0 %v137, 16
  %v139 = vpop.permute.xlu0 %138
  %vm140 = vcmask 64512
  %s141 = scalar_lea.vmem %s1, 14
  %142 = vst.msk [vmem:[%s141] ss:$16 sm:$0x3] %vm140, %v139
  %s143 = scalar_lea.vmem %s1, 14
  %144 = vst.msk [vmem:[%s143] ss:$16 sm:$0xc] %vm140, %v139
  %s145 = scalar_lea.vmem %s1, 14
  %146 = vst.msk [vmem:[%s145] ss:$16 sm:$0x30] %vm140, %v139
  %v147 = vld [vmem:[%s0] sm:$0x3f]
  %148 = vrot.lane.b32.xlu0 %v147, 8
  %v149 = vpop.permute.xlu0 %148
  %vm150 = vcmask 64512
  %s151 = scalar_lea.vmem %s1, 15
  %152 = vst.msk [vmem:[%s151] ss:$16 sm:$0x3] %vm150, %v149
  %s153 = scalar_lea.vmem %s1, 15
  %154 = vst.msk [vmem:[%s153] ss:$16 sm:$0xc] %vm150, %v149
  %s155 = scalar_lea.vmem %s1, 15
  %156 = vst.msk [vmem:[%s155] ss:$16 sm:$0x30] %vm150, %v149

// kernel: octree_trilinear.1
$region0: #{octree_trilinear.1}
  #allocation0 [shape = 'u32[]', space=smem, size = 0x4, offset = 0x4, fixed_abs, tag = 'smem constant byte address 0x4 - core index']
  #allocation1 [shape = 'u32[144,128]{1,0:T(1,128)}', space=vmem, size = 0x12000, scoped, tag = 'internal scratch']
  #allocation2 [shape = 'f32[128,128]{1,0:T(8,128)}', space=vmem, size = 0x10000, scoped, tag = 'scratch operand']
  %s0 = inlined_call_operand.vmem [shape: s32[128,8], index: 0, kind: input, shape index: {}]
  %s1 = inlined_call_operand.vmem [shape: f32[128,8], index: 1, kind: input, shape index: {}]
  %s2 = inlined_call_operand.vmem [shape: f32[512,128], index: 2, kind: input, shape index: {}]
  %s3 = inlined_call_operand.vmem [shape: f32[128,128], index: 3, kind: output, shape index: {}]
  %s4 = sld [smem:[#allocation0]]
  $region53: #{octree_trilinear.1} parent=0
    _
  %s6 = ssub.s32 1, %s4
  %s7 = scalar_select 0, %s6, %s4
  loop: start=0, step=1, limit=4
  $region2: #{octree_trilinear.1} parent=0 // loop_pre_header
    _
  $region3: #{octree_trilinear.1} parent=0 // loop_header
    %s9 = sphi 0, %s13
    %p10 = scmp.ge.s32.totalorder %s9, 4
    %s16 = sphi 0, %s28
    %s17 = sphi 0, %s24
    %s18 = sphi 0, %s16
    %s19 = sphi 0, %s17
    %s20 = sphi 0, %s18
    %s21 = sphi 0, %s19
    %s31 = sphi 0, %s33
    %s34 = sphi 0, %s31
    %s35 = sphi 0, %s34
    %s51 = sphi 0, %s35
    %s57 = sphi 0, %s59
    %s60 = sphi 0, %s57
    %s61 = sphi 0, %s60
    %s77 = sphi 0, %s61
    %s83 = sphi 0, %s85
    %s86 = sphi 0, %s83
    %s87 = sphi 0, %s86
    %s103 = sphi 0, %s87
    %s109 = sphi 0, %s111
    %s112 = sphi 0, %s109
    %s113 = sphi 0, %s112
    %s129 = sphi 0, %s113
  $region4: #{octree_trilinear.1} parent=0 // loop_header_branch
    %12 = sbr.rel (%p10) target = $region8
  $region5: #{octree_trilinear.1} parent=0 // loop_body
    %s14 = ssub.s32 %s9, 1
    %s15 = ssub.s32 %s9, 2
    %s22 = sadd.s32 1, %s17
    %p23 = scmp.ge.s32.totalorder %s22, 2
    %s24 = scalar_select %p23, 0, %s22
    %s25 = sadd.s32 1, %s16
    %s26 = scalar_select %p23, %s25, %s16
    %p27 = scmp.ge.s32.totalorder %s26, 1
    %s28 = scalar_select %p27, 0, %s26
    %s29 = ssub.s32 %s16, %s28
    %p30 = scmp.eq.s32.totalorder %s29, 0
    %s32 = sadd.s32 %s31, 1
    %s33 = scalar_select %p30, %s31, %s32
    %p36 = pneg %p30
    %p37 = scmp.eq.s32.totalorder %s9, 1
    %p38 = por %p36, %p37
    %p39 = scmp.ne.s32.totalorder %s31, %s34
    %p40 = scmp.eq.s32.totalorder %s9, 0
    %p41 = por %p39, %p40
    %p42 = scmp.ne.s32.totalorder %s31, %s34
    %p43 = scmp.eq.s32.totalorder %s14, 1
    %p44 = por %p42, %p43
    %p45 = scmp.ne.s32.totalorder %s34, %s35
    %p46 = scmp.eq.s32.totalorder %s14, 0
    %p47 = por %p45, %p46
    %p48 = scmp.ne.s32.totalorder %s34, %s35
    %p49 = scmp.eq.s32.totalorder %s15, 1
    %p50 = por %p48, %p49
    %p52 = scmp.ne.s32.totalorder %s35, %s51
    %p53 = scmp.eq.s32.totalorder %s15, 0
    %p54 = por %p52, %p53
    %s55 = ssub.s32 %s16, %s28
    %p56 = scmp.eq.s32.totalorder %s55, 0
    %s58 = sadd.s32 %s57, 1
    %s59 = scalar_select %p56, %s57, %s58
    %p62 = pneg %p56
    %p63 = scmp.eq.s32.totalorder %s9, 1
    %p64 = por %p62, %p63
    %p65 = scmp.ne.s32.totalorder %s57, %s60
    %p66 = scmp.eq.s32.totalorder %s9, 0
    %p67 = por %p65, %p66
    %p68 = scmp.ne.s32.totalorder %s57, %s60
    %p69 = scmp.eq.s32.totalorder %s14, 1
    %p70 = por %p68, %p69
    %p71 = scmp.ne.s32.totalorder %s60, %s61
    %p72 = scmp.eq.s32.totalorder %s14, 0
    %p73 = por %p71, %p72
    %p74 = scmp.ne.s32.totalorder %s60, %s61
    %p75 = scmp.eq.s32.totalorder %s15, 1
    %p76 = por %p74, %p75
    %p78 = scmp.ne.s32.totalorder %s61, %s77
    %p79 = scmp.eq.s32.totalorder %s15, 0
    %p80 = por %p78, %p79
    %s81 = ssub.s32 %s17, %s24
    %p82 = scmp.eq.s32.totalorder %s81, 0
    %s84 = sadd.s32 %s83, 1
    %s85 = scalar_select %p82, %s83, %s84
    %p88 = pneg %p82
    %p89 = scmp.eq.s32.totalorder %s9, 1
    %p90 = por %p88, %p89
    %p91 = scmp.ne.s32.totalorder %s83, %s86
    %p92 = scmp.eq.s32.totalorder %s9, 0
    %p93 = por %p91, %p92
    %p94 = scmp.ne.s32.totalorder %s83, %s86
    %p95 = scmp.eq.s32.totalorder %s14, 1
    %p96 = por %p94, %p95
    %p97 = scmp.ne.s32.totalorder %s86, %s87
    %p98 = scmp.eq.s32.totalorder %s14, 0
    %p99 = por %p97, %p98
    %p100 = scmp.ne.s32.totalorder %s86, %s87
    %p101 = scmp.eq.s32.totalorder %s15, 1
    %p102 = por %p100, %p101
    %p104 = scmp.ne.s32.totalorder %s87, %s103
    %p105 = scmp.eq.s32.totalorder %s15, 0
    %p106 = por %p104, %p105
    %s107 = ssub.s32 %s16, %s28
    %p108 = scmp.eq.s32.totalorder %s107, 0
    %s110 = sadd.s32 %s109, 1
    %s111 = scalar_select %p108, %s109, %s110
    %p114 = pneg %p108
    %p115 = scmp.eq.s32.totalorder %s9, 1
    %p116 = por %p114, %p115
    %p117 = scmp.ne.s32.totalorder %s109, %s112
    %p118 = scmp.eq.s32.totalorder %s9, 0
    %p119 = por %p117, %p118
    %p120 = scmp.ne.s32.totalorder %s109, %s112
    %p121 = scmp.eq.s32.totalorder %s14, 1
    %p122 = por %p120, %p121
    %p123 = scmp.ne.s32.totalorder %s112, %s113
    %p124 = scmp.eq.s32.totalorder %s14, 0
    %p125 = por %p123, %p124
    %p126 = scmp.ne.s32.totalorder %s112, %s113
    %p127 = scmp.eq.s32.totalorder %s15, 1
    %p128 = por %p126, %p127
    %p130 = scmp.ne.s32.totalorder %s113, %s129
    %p131 = scmp.eq.s32.totalorder %s15, 0
    %p132 = por %p130, %p131
    %p133 = scmp.le.s32.totalorder 1, %s9
    %p134 = scmp.lt.s32.totalorder %s9, 3
    %p135 = pnand %p133, %p134
    %p136 = pneg %p135
    // Predicated region
    $region9: #{octree_trilinear.1} parent=5 // pred_check
      _
    $region10: #{octree_trilinear.1} parent=5 // pred_check_branch
      %138 = sbr.rel (%p135) target = $region12
    $region11: #{octree_trilinear.1} parent=5 // pred_region
      %s139 = ssub.s32 %s9, 1
      // Predicated region
      $region13: #{octree_trilinear.1} parent=11 // pred_check
        %p140 = pneg %p47
      $region14: #{octree_trilinear.1} parent=11 // pred_check_branch
        %142 = sbr.rel (%p140) target = $region16
      $region15: #{octree_trilinear.1} parent=11 // pred_region
        %s143 = smul.u32 16, %s18
        %p144 = scmp.lt.s32.totalorder %s143, 15
        %s145 = scalar_select %p144, %s143, 15
        %s146 = smul.addr %s145, 8
        %s147 = scalar_lea.vmem %s0, %s146
        %s148 = smul.u32 16, %s18
      $region16: #{octree_trilinear.1} parent=11 // pred_fallthru
        _
      // Predicated region
      $region17: #{octree_trilinear.1} parent=11 // pred_check
        %p149 = pneg %p73
      $region18: #{octree_trilinear.1} parent=11 // pred_check_branch
        %151 = sbr.rel (%p149) target = $region20
      $region19: #{octree_trilinear.1} parent=11 // pred_region
        %s152 = smul.u32 16, %s18
        %p153 = scmp.lt.s32.totalorder %s152, 15
        %s154 = scalar_select %p153, %s152, 15
        %s155 = smul.addr %s154, 8
        %s156 = scalar_lea.vmem %s1, %s155
        %s157 = smul.u32 16, %s18
      $region20: #{octree_trilinear.1} parent=11 // pred_fallthru
        _
    $region12: #{octree_trilinear.1} parent=5 // pred_fallthru
      _
    %p158 = scmp.lt.s32.totalorder %s9, 2
    // Predicated region
    $region21: #{octree_trilinear.1} parent=5 // pred_check
      %p159 = pneg %p158
    $region22: #{octree_trilinear.1} parent=5 // pred_check_branch
      %161 = sbr.rel (%p159) target = $region24
    $region23: #{octree_trilinear.1} parent=5 // pred_region
      // Predicated region
      $region25: #{octree_trilinear.1} parent=23 // pred_check
        %p162 = pneg %p93
      $region26: #{octree_trilinear.1} parent=23 // pred_check_branch
        %164 = sbr.rel (%p162) target = $region28
      $region27: #{octree_trilinear.1} parent=23 // pred_region
        %s165 = smul.u32 32, %s17
        %p166 = scmp.lt.s32.totalorder %s165, 63
        %s167 = scalar_select %p166, %s165, 63
        %s168 = smul.addr %s167, 8
        %s169 = scalar_lea.vmem %s2, %s168
        %s170 = smul.u32 32, %s17
      $region28: #{octree_trilinear.1} parent=23 // pred_fallthru
        _
    $region24: #{octree_trilinear.1} parent=5 // pred_fallthru
      _
    %p171 = scmp.le.s32.totalorder 1, %s9
    %p172 = scmp.lt.s32.totalorder %s9, 3
    %p173 = pnand %p171, %p172
    %p174 = pneg %p173
    // Predicated region
    $region29: #{octree_trilinear.1} parent=5 // pred_check
      _
    $region30: #{octree_trilinear.1} parent=5 // pred_check_branch
      %176 = sbr.rel (%p173) target = $region32
    $region31: #{octree_trilinear.1} parent=5 // pred_region
      %s177 = ssub.s32 %s9, 1
      %s178 = smul.u32 16, %s18
      %p179 = scmp.lt.s32.totalorder %s178, 15
      %s180 = scalar_select %p179, %s178, 15
      %s181 = smul.addr %s180, 8
      %s182 = scalar_lea.vmem %s0, %s181
      %p183 = pneg %p47
      %p184 = pneg %p44
      %s185 = smul.u32 16, %s18
      %p186 = scmp.lt.s32.totalorder %s185, 15
      %s187 = scalar_select %p186, %s185, 15
      %s188 = smul.addr %s187, 8
      %s189 = scalar_lea.vmem %s1, %s188
      %p190 = pneg %p73
      %p191 = pneg %p70
      %s192 = smul.u32 32, %s19
      %p193 = scmp.lt.s32.totalorder %s192, 63
      %s194 = scalar_select %p193, %s192, 63
      %s195 = smul.addr %s194, 8
      %s196 = scalar_lea.vmem %s2, %s195
      %p197 = pneg %p99
      %p198 = pneg %p96
      %p199 = pneg %p125
      %p200 = pneg %p122
      %s201 = smul.u32 16, %s18
      %p202 = scmp.lt.s32.totalorder %s201, 15
      %s203 = scalar_select %p202, %s201, 15
      %s204 = smul.addr %s203, 8
      %s205 = scalar_lea.vmem %s3, %s204
      %s206 = smul.u32 16, %s18
      %p207 = scmp.lt.s32.totalorder %s206, 15
      %s208 = scalar_select %p207, %s206, 15
      %s209 = smul.addr %s208, 8
      %s210 = scalar_lea.vmem %s0, %s209
      %s211 = smul.u32 16, %s18
      %s212 = smul.u32 16, %s18
      %p213 = scmp.lt.s32.totalorder %s212, 15
      %s214 = scalar_select %p213, %s212, 15
      %s215 = smul.addr %s214, 8
      %s216 = scalar_lea.vmem %s1, %s215
      %s217 = smul.u32 16, %s18
      %s218 = smul.u32 32, %s19
      %p219 = scmp.lt.s32.totalorder %s218, 63
      %s220 = scalar_select %p219, %s218, 63
      %s221 = smul.addr %s220, 8
      %s222 = scalar_lea.vmem %s2, %s221
      %s223 = smul.u32 32, %s19
      %s224 = smul.u32 16, %s18
      %p225 = scmp.lt.s32.totalorder %s224, 15
      %s226 = scalar_select %p225, %s224, 15
      %s227 = smul.addr %s226, 8
      %s228 = scalar_lea.vmem %s3, %s227
      %s229 = smul.u32 16, %s18
      %p230 = scmp.eq.s32.totalorder %s19, 0
      // Predicated region
      $region33: #{octree_trilinear.1} parent=31 // pred_check
        %p231 = pneg %p230
      $region34: #{octree_trilinear.1} parent=31 // pred_check_branch
        %233 = sbr.rel (%p231) target = $region36
      $region35: #{octree_trilinear.1} parent=31 // pred_region
        %234 = vst [vmem:[#allocation2] sm:$0xff] 0.0
        %235 = vst [vmem:[#allocation2 + $0x8] sm:$0xff] 0.0
        %236 = vst [vmem:[#allocation2 + $0x10] sm:$0xff] 0.0
        %237 = vst [vmem:[#allocation2 + $0x18] sm:$0xff] 0.0
        %238 = vst [vmem:[#allocation2 + $0x20] sm:$0xff] 0.0
        %239 = vst [vmem:[#allocation2 + $0x28] sm:$0xff] 0.0
        %240 = vst [vmem:[#allocation2 + $0x30] sm:$0xff] 0.0
        %241 = vst [vmem:[#allocation2 + $0x38] sm:$0xff] 0.0
        %242 = vst [vmem:[#allocation2 + $0x40] sm:$0xff] 0.0
        %243 = vst [vmem:[#allocation2 + $0x48] sm:$0xff] 0.0
        %244 = vst [vmem:[#allocation2 + $0x50] sm:$0xff] 0.0
        %245 = vst [vmem:[#allocation2 + $0x58] sm:$0xff] 0.0
        %246 = vst [vmem:[#allocation2 + $0x60] sm:$0xff] 0.0
        %247 = vst [vmem:[#allocation2 + $0x68] sm:$0xff] 0.0
        %248 = vst [vmem:[#allocation2 + $0x70] sm:$0xff] 0.0
        %249 = vst [vmem:[#allocation2 + $0x78] sm:$0xff] 0.0
      $region36: #{octree_trilinear.1} parent=31 // pred_fallthru
        _
      %v250 = vld [vmem:[%s210] sm:$0xff]
      %v251 = vld [vmem:[%s210 + $0x8] sm:$0xff]
      %v252 = vld [vmem:[%s210 + $0x10] sm:$0xff]
      %v253 = vld [vmem:[%s210 + $0x18] sm:$0xff]
      %v254 = vld [vmem:[%s210 + $0x20] sm:$0xff]
      %v255 = vld [vmem:[%s210 + $0x28] sm:$0xff]
      %v256 = vld [vmem:[%s210 + $0x30] sm:$0xff]
      %v257 = vld [vmem:[%s210 + $0x38] sm:$0xff]
      %v258 = vld [vmem:[%s210 + $0x40] sm:$0xff]
      %v259 = vld [vmem:[%s210 + $0x48] sm:$0xff]
      %v260 = vld [vmem:[%s210 + $0x50] sm:$0xff]
      %v261 = vld [vmem:[%s210 + $0x58] sm:$0xff]
      %v262 = vld [vmem:[%s210 + $0x60] sm:$0xff]
      %v263 = vld [vmem:[%s210 + $0x68] sm:$0xff]
      %v264 = vld [vmem:[%s210 + $0x70] sm:$0xff]
      %v265 = vld [vmem:[%s210 + $0x78] sm:$0xff]
      %v266 = vld [vmem:[%s216] sm:$0xff]
      %v267 = vld [vmem:[%s216 + $0x8] sm:$0xff]
      %v268 = vld [vmem:[%s216 + $0x10] sm:$0xff]
      %v269 = vld [vmem:[%s216 + $0x18] sm:$0xff]
      %v270 = vld [vmem:[%s216 + $0x20] sm:$0xff]
      %v271 = vld [vmem:[%s216 + $0x28] sm:$0xff]
      %v272 = vld [vmem:[%s216 + $0x30] sm:$0xff]
      %v273 = vld [vmem:[%s216 + $0x38] sm:$0xff]
      %v274 = vld [vmem:[%s216 + $0x40] sm:$0xff]
      %v275 = vld [vmem:[%s216 + $0x48] sm:$0xff]
      %v276 = vld [vmem:[%s216 + $0x50] sm:$0xff]
      %v277 = vld [vmem:[%s216 + $0x58] sm:$0xff]
      %v278 = vld [vmem:[%s216 + $0x60] sm:$0xff]
      %v279 = vld [vmem:[%s216 + $0x68] sm:$0xff]
      %v280 = vld [vmem:[%s216 + $0x70] sm:$0xff]
      %v281 = vld [vmem:[%s216 + $0x78] sm:$0xff]
      %v282 = vlaneseq
      %v283 = vand.u32 %v282, 127
      %v284 = vadd.s32 %v283, 128
      %s285 = smul.u32 %s19, 256
      %v286 = vstv %s285
      %v287 = vadd.s32 %v283, %v286
      %v288 = vadd.s32 %v284, %v286
      %289 = vset.pattern.permute.xlu0 0
      %290 = vperm.xlu0 %289, %v250
      %v291 = vpop.permute.xlu0 %290
      %292 = vset.pattern.permute.xlu0 0
      %293 = vperm.xlu0 %292, %v251
      %v294 = vpop.permute.xlu0 %293
      %295 = vset.pattern.permute.xlu0 0
      %296 = vperm.xlu0 %295, %v252
      %v297 = vpop.permute.xlu0 %296
      %298 = vset.pattern.permute.xlu0 0
      %299 = vperm.xlu0 %298, %v253
      %v300 = vpop.permute.xlu0 %299
      %301 = vset.pattern.permute.xlu0 0
      %302 = vperm.xlu0 %301, %v254
      %v303 = vpop.permute.xlu0 %302
      %304 = vset.pattern.permute.xlu0 0
      %305 = vperm.xlu0 %304, %v255
      %v306 = vpop.permute.xlu0 %305
      %307 = vset.pattern.permute.xlu0 0
      %308 = vperm.xlu0 %307, %v256
      %v309 = vpop.permute.xlu0 %308
      %310 = vset.pattern.permute.xlu0 0
      %311 = vperm.xlu0 %310, %v257
      %v312 = vpop.permute.xlu0 %311
      %313 = vset.pattern.permute.xlu0 0
      %314 = vperm.xlu0 %313, %v258
      %v315 = vpop.permute.xlu0 %314
      %316 = vset.pattern.permute.xlu0 0
      %317 = vperm.xlu0 %316, %v259
      %v318 = vpop.permute.xlu0 %317
      %319 = vset.pattern.permute.xlu0 0
      %320 = vperm.xlu0 %319, %v260
      %v321 = vpop.permute.xlu0 %320
      %322 = vset.pattern.permute.xlu0 0
      %323 = vperm.xlu0 %322, %v261
      %v324 = vpop.permute.xlu0 %323
      %325 = vset.pattern.permute.xlu0 0
      %326 = vperm.xlu0 %325, %v262
      %v327 = vpop.permute.xlu0 %326
      %328 = vset.pattern.permute.xlu0 0
      %329 = vperm.xlu0 %328, %v263
      %v330 = vpop.permute.xlu0 %329
      %331 = vset.pattern.permute.xlu0 0
      %332 = vperm.xlu0 %331, %v264
      %v333 = vpop.permute.xlu0 %332
      %334 = vset.pattern.permute.xlu0 0
      %335 = vperm.xlu0 %334, %v265
      %v336 = vpop.permute.xlu0 %335
      %vm337 = vcmp.eq.s32.totalorder %v291, %v287
      %vm338 = vcmp.eq.s32.totalorder %v291, %v288
      %vm339 = vcmp.eq.s32.totalorder %v294, %v287
      %vm340 = vcmp.eq.s32.totalorder %v294, %v288
      %vm341 = vcmp.eq.s32.totalorder %v297, %v287
      %vm342 = vcmp.eq.s32.totalorder %v297, %v288
      %vm343 = vcmp.eq.s32.totalorder %v300, %v287
      %vm344 = vcmp.eq.s32.totalorder %v300, %v288
      %vm345 = vcmp.eq.s32.totalorder %v303, %v287
      %vm346 = vcmp.eq.s32.totalorder %v303, %v288
      %vm347 = vcmp.eq.s32.totalorder %v306, %v287
      %vm348 = vcmp.eq.s32.totalorder %v306, %v288
      %vm349 = vcmp.eq.s32.totalorder %v309, %v287
      %vm350 = vcmp.eq.s32.totalorder %v309, %v288
      %vm351 = vcmp.eq.s32.totalorder %v312, %v287
      %vm352 = vcmp.eq.s32.totalorder %v312, %v288
      %vm353 = vcmp.eq.s32.totalorder %v315, %v287
      %vm354 = vcmp.eq.s32.totalorder %v315, %v288
      %vm355 = vcmp.eq.s32.totalorder %v318, %v287
      %vm356 = vcmp.eq.s32.totalorder %v318, %v288
      %vm357 = vcmp.eq.s32.totalorder %v321, %v287
      %vm358 = vcmp.eq.s32.totalorder %v321, %v288
      %vm359 = vcmp.eq.s32.totalorder %v324, %v287
      %vm360 = vcmp.eq.s32.totalorder %v324, %v288
      %vm361 = vcmp.eq.s32.totalorder %v327, %v287
      %vm362 = vcmp.eq.s32.totalorder %v327, %v288
      %vm363 = vcmp.eq.s32.totalorder %v330, %v287
      %vm364 = vcmp.eq.s32.totalorder %v330, %v288
      %vm365 = vcmp.eq.s32.totalorder %v333, %v287
      %vm366 = vcmp.eq.s32.totalorder %v333, %v288
      %vm367 = vcmp.eq.s32.totalorder %v336, %v287
      %vm368 = vcmp.eq.s32.totalorder %v336, %v288
      %370 = vset.pattern.permute.xlu0 0
      %371 = vperm.xlu0 %370, %v266
      %v372 = vpop.permute.xlu0 %371
      %375 = vset.pattern.permute.xlu0 0
      %376 = vperm.xlu0 %375, %v267
      %v377 = vpop.permute.xlu0 %376
      %380 = vset.pattern.permute.xlu0 0
      %381 = vperm.xlu0 %380, %v268
      %v382 = vpop.permute.xlu0 %381
      %385 = vset.pattern.permute.xlu0 0
      %386 = vperm.xlu0 %385, %v269
      %v387 = vpop.permute.xlu0 %386
      %390 = vset.pattern.permute.xlu0 0
      %391 = vperm.xlu0 %390, %v270
      %v392 = vpop.permute.xlu0 %391
      %395 = vset.pattern.permute.xlu0 0
      %396 = vperm.xlu0 %395, %v271
      %v397 = vpop.permute.xlu0 %396
      %400 = vset.pattern.permute.xlu0 0
      %401 = vperm.xlu0 %400, %v272
      %v402 = vpop.permute.xlu0 %401
      %405 = vset.pattern.permute.xlu0 0
      %406 = vperm.xlu0 %405, %v273
      %v407 = vpop.permute.xlu0 %406
      %410 = vset.pattern.permute.xlu0 0
      %411 = vperm.xlu0 %410, %v274
      %v412 = vpop.permute.xlu0 %411
      %415 = vset.pattern.permute.xlu0 0
      %416 = vperm.xlu0 %415, %v275
      %v417 = vpop.permute.xlu0 %416
      %420 = vset.pattern.permute.xlu0 0
      %421 = vperm.xlu0 %420, %v276
      %v422 = vpop.permute.xlu0 %421
      %425 = vset.pattern.permute.xlu0 0
      %426 = vperm.xlu0 %425, %v277
      %v427 = vpop.permute.xlu0 %426
      %430 = vset.pattern.permute.xlu0 0
      %431 = vperm.xlu0 %430, %v278
      %v432 = vpop.permute.xlu0 %431
      %435 = vset.pattern.permute.xlu0 0
      %436 = vperm.xlu0 %435, %v279
      %v437 = vpop.permute.xlu0 %436
      %440 = vset.pattern.permute.xlu0 0
      %441 = vperm.xlu0 %440, %v280
      %v442 = vpop.permute.xlu0 %441
      %445 = vset.pattern.permute.xlu0 0
      %446 = vperm.xlu0 %445, %v281
      %v447 = vpop.permute.xlu0 %446
      %v449 = vsel %vm337, %v372, 0.0
      %v450 = vsel %vm338, %v372, 0.0
      %v451 = vsel %vm339, %v377, 0.0
      %v452 = vsel %vm340, %v377, 0.0
      %v453 = vsel %vm341, %v382, 0.0
      %v454 = vsel %vm342, %v382, 0.0
      %v455 = vsel %vm343, %v387, 0.0
      %v456 = vsel %vm344, %v387, 0.0
      %v457 = vsel %vm345, %v392, 0.0
      %v458 = vsel %vm346, %v392, 0.0
      %v459 = vsel %vm347, %v397, 0.0
      %v460 = vsel %vm348, %v397, 0.0
      %v461 = vsel %vm349, %v402, 0.0
      %v462 = vsel %vm350, %v402, 0.0
      %v463 = vsel %vm351, %v407, 0.0
      %v464 = vsel %vm352, %v407, 0.0
      %v465 = vsel %vm353, %v412, 0.0
      %v466 = vsel %vm354, %v412, 0.0
      %v467 = vsel %vm355, %v417, 0.0
      %v468 = vsel %vm356, %v417, 0.0
      %v469 = vsel %vm357, %v422, 0.0
      %v470 = vsel %vm358, %v422, 0.0
      %v471 = vsel %vm359, %v427, 0.0
      %v472 = vsel %vm360, %v427, 0.0
      %v473 = vsel %vm361, %v432, 0.0
      %v474 = vsel %vm362, %v432, 0.0
      %v475 = vsel %vm363, %v437, 0.0
      %v476 = vsel %vm364, %v437, 0.0
      %v477 = vsel %vm365, %v442, 0.0
      %v478 = vsel %vm366, %v442, 0.0
      %v479 = vsel %vm367, %v447, 0.0
      %v480 = vsel %vm368, %v447, 0.0
      %v481 = vadd.f32 %v449, 0.0
      %v482 = vadd.f32 %v450, 0.0
      %v483 = vadd.f32 %v451, 0.0
      %v484 = vadd.f32 %v452, 0.0
      %v485 = vadd.f32 %v453, 0.0
      %v486 = vadd.f32 %v454, 0.0
      %v487 = vadd.f32 %v455, 0.0
      %v488 = vadd.f32 %v456, 0.0
      %v489 = vadd.f32 %v457, 0.0
      %v490 = vadd.f32 %v458, 0.0
      %v491 = vadd.f32 %v459, 0.0
      %v492 = vadd.f32 %v460, 0.0
      %v493 = vadd.f32 %v461, 0.0
      %v494 = vadd.f32 %v462, 0.0
      %v495 = vadd.f32 %v463, 0.0
      %v496 = vadd.f32 %v464, 0.0
      %v497 = vadd.f32 %v465, 0.0
      %v498 = vadd.f32 %v466, 0.0
      %v499 = vadd.f32 %v467, 0.0
      %v500 = vadd.f32 %v468, 0.0
      %v501 = vadd.f32 %v469, 0.0
      %v502 = vadd.f32 %v470, 0.0
      %v503 = vadd.f32 %v471, 0.0
      %v504 = vadd.f32 %v472, 0.0
      %v505 = vadd.f32 %v473, 0.0
      %v506 = vadd.f32 %v474, 0.0
      %v507 = vadd.f32 %v475, 0.0
      %v508 = vadd.f32 %v476, 0.0
      %v509 = vadd.f32 %v477, 0.0
      %v510 = vadd.f32 %v478, 0.0
      %v511 = vadd.f32 %v479, 0.0
      %v512 = vadd.f32 %v480, 0.0
      %513 = vset.pattern.permute.xlu0 1
      %514 = vperm.xlu0 %513, %v250
      %v515 = vpop.permute.xlu0 %514
      %516 = vset.pattern.permute.xlu0 1
      %517 = vperm.xlu0 %516, %v251
      %v518 = vpop.permute.xlu0 %517
      %519 = vset.pattern.permute.xlu0 1
      %520 = vperm.xlu0 %519, %v252
      %v521 = vpop.permute.xlu0 %520
      %522 = vset.pattern.permute.xlu0 1
      %523 = vperm.xlu0 %522, %v253
      %v524 = vpop.permute.xlu0 %523
      %525 = vset.pattern.permute.xlu0 1
      %526 = vperm.xlu0 %525, %v254
      %v527 = vpop.permute.xlu0 %526
      %528 = vset.pattern.permute.xlu0 1
      %529 = vperm.xlu0 %528, %v255
      %v530 = vpop.permute.xlu0 %529
      %531 = vset.pattern.permute.xlu0 1
      %532 = vperm.xlu0 %531, %v256
      %v533 = vpop.permute.xlu0 %532
      %534 = vset.pattern.permute.xlu0 1
      %535 = vperm.xlu0 %534, %v257
      %v536 = vpop.permute.xlu0 %535
      %537 = vset.pattern.permute.xlu0 1
      %538 = vperm.xlu0 %537, %v258
      %v539 = vpop.permute.xlu0 %538
      %540 = vset.pattern.permute.xlu0 1
      %541 = vperm.xlu0 %540, %v259
      %v542 = vpop.permute.xlu0 %541
      %543 = vset.pattern.permute.xlu0 1
      %544 = vperm.xlu0 %543, %v260
      %v545 = vpop.permute.xlu0 %544
      %546 = vset.pattern.permute.xlu0 1
      %547 = vperm.xlu0 %546, %v261
      %v548 = vpop.permute.xlu0 %547
      %549 = vset.pattern.permute.xlu0 1
      %550 = vperm.xlu0 %549, %v262
      %v551 = vpop.permute.xlu0 %550
      %552 = vset.pattern.permute.xlu0 1
      %553 = vperm.xlu0 %552, %v263
      %v554 = vpop.permute.xlu0 %553
      %555 = vset.pattern.permute.xlu0 1
      %556 = vperm.xlu0 %555, %v264
      %v557 = vpop.permute.xlu0 %556
      %558 = vset.pattern.permute.xlu0 1
      %559 = vperm.xlu0 %558, %v265
      %v560 = vpop.permute.xlu0 %559
      %vm561 = vcmp.eq.s32.totalorder %v515, %v287
      %vm562 = vcmp.eq.s32.totalorder %v515, %v288
      %vm563 = vcmp.eq.s32.totalorder %v518, %v287
      %vm564 = vcmp.eq.s32.totalorder %v518, %v288
      %vm565 = vcmp.eq.s32.totalorder %v521, %v287
      %vm566 = vcmp.eq.s32.totalorder %v521, %v288
      %vm567 = vcmp.eq.s32.totalorder %v524, %v287
      %vm568 = vcmp.eq.s32.totalorder %v524, %v288
      %vm569 = vcmp.eq.s32.totalorder %v527, %v287
      %vm570 = vcmp.eq.s32.totalorder %v527, %v288
      %vm571 = vcmp.eq.s32.totalorder %v530, %v287
      %vm572 = vcmp.eq.s32.totalorder %v530, %v288
      %vm573 = vcmp.eq.s32.totalorder %v533, %v287
      %vm574 = vcmp.eq.s32.totalorder %v533, %v288
      %vm575 = vcmp.eq.s32.totalorder %v536, %v287
      %vm576 = vcmp.eq.s32.totalorder %v536, %v288
      %vm577 = vcmp.eq.s32.totalorder %v539, %v287
      %vm578 = vcmp.eq.s32.totalorder %v539, %v288
      %vm579 = vcmp.eq.s32.totalorder %v542, %v287
      %vm580 = vcmp.eq.s32.totalorder %v542, %v288
      %vm581 = vcmp.eq.s32.totalorder %v545, %v287
      %vm582 = vcmp.eq.s32.totalorder %v545, %v288
      %vm583 = vcmp.eq.s32.totalorder %v548, %v287
      %vm584 = vcmp.eq.s32.totalorder %v548, %v288
      %vm585 = vcmp.eq.s32.totalorder %v551, %v287
      %vm586 = vcmp.eq.s32.totalorder %v551, %v288
      %vm587 = vcmp.eq.s32.totalorder %v554, %v287
      %vm588 = vcmp.eq.s32.totalorder %v554, %v288
      %vm589 = vcmp.eq.s32.totalorder %v557, %v287
      %vm590 = vcmp.eq.s32.totalorder %v557, %v288
      %vm591 = vcmp.eq.s32.totalorder %v560, %v287
      %vm592 = vcmp.eq.s32.totalorder %v560, %v288
      %593 = vset.pattern.permute.xlu0 1
      %594 = vperm.xlu0 %593, %v266
      %v595 = vpop.permute.xlu0 %594
      %597 = vset.pattern.permute.xlu0 1
      %598 = vperm.xlu0 %597, %v267
      %v599 = vpop.permute.xlu0 %598
      %601 = vset.pattern.permute.xlu0 1
      %602 = vperm.xlu0 %601, %v268
      %v603 = vpop.permute.xlu0 %602
      %605 = vset.pattern.permute.xlu0 1
      %606 = vperm.xlu0 %605, %v269
      %v607 = vpop.permute.xlu0 %606
      %609 = vset.pattern.permute.xlu0 1
      %610 = vperm.xlu0 %609, %v270
      %v611 = vpop.permute.xlu0 %610
      %613 = vset.pattern.permute.xlu0 1
      %614 = vperm.xlu0 %613, %v271
      %v615 = vpop.permute.xlu0 %614
      %617 = vset.pattern.permute.xlu0 1
      %618 = vperm.xlu0 %617, %v272
      %v619 = vpop.permute.xlu0 %618
      %621 = vset.pattern.permute.xlu0 1
      %622 = vperm.xlu0 %621, %v273
      %v623 = vpop.permute.xlu0 %622
      %625 = vset.pattern.permute.xlu0 1
      %626 = vperm.xlu0 %625, %v274
      %v627 = vpop.permute.xlu0 %626
      %629 = vset.pattern.permute.xlu0 1
      %630 = vperm.xlu0 %629, %v275
      %v631 = vpop.permute.xlu0 %630
      %633 = vset.pattern.permute.xlu0 1
      %634 = vperm.xlu0 %633, %v276
      %v635 = vpop.permute.xlu0 %634
      %637 = vset.pattern.permute.xlu0 1
      %638 = vperm.xlu0 %637, %v277
      %v639 = vpop.permute.xlu0 %638
      %641 = vset.pattern.permute.xlu0 1
      %642 = vperm.xlu0 %641, %v278
      %v643 = vpop.permute.xlu0 %642
      %645 = vset.pattern.permute.xlu0 1
      %646 = vperm.xlu0 %645, %v279
      %v647 = vpop.permute.xlu0 %646
      %649 = vset.pattern.permute.xlu0 1
      %650 = vperm.xlu0 %649, %v280
      %v651 = vpop.permute.xlu0 %650
      %653 = vset.pattern.permute.xlu0 1
      %654 = vperm.xlu0 %653, %v281
      %v655 = vpop.permute.xlu0 %654
      %v657 = vsel %vm561, %v595, 0.0
      %v658 = vsel %vm562, %v595, 0.0
      %v659 = vsel %vm563, %v599, 0.0
      %v660 = vsel %vm564, %v599, 0.0
      %v661 = vsel %vm565, %v603, 0.0
      %v662 = vsel %vm566, %v603, 0.0
      %v663 = vsel %vm567, %v607, 0.0
      %v664 = vsel %vm568, %v607, 0.0
      %v665 = vsel %vm569, %v611, 0.0
      %v666 = vsel %vm570, %v611, 0.0
      %v667 = vsel %vm571, %v615, 0.0
      %v668 = vsel %vm572, %v615, 0.0
      %v669 = vsel %vm573, %v619, 0.0
      %v670 = vsel %vm574, %v619, 0.0
      %v671 = vsel %vm575, %v623, 0.0
      %v672 = vsel %vm576, %v623, 0.0
      %v673 = vsel %vm577, %v627, 0.0
      %v674 = vsel %vm578, %v627, 0.0
      %v675 = vsel %vm579, %v631, 0.0
      %v676 = vsel %vm580, %v631, 0.0
      %v677 = vsel %vm581, %v635, 0.0
      %v678 = vsel %vm582, %v635, 0.0
      %v679 = vsel %vm583, %v639, 0.0
      %v680 = vsel %vm584, %v639, 0.0
      %v681 = vsel %vm585, %v643, 0.0
      %v682 = vsel %vm586, %v643, 0.0
      %v683 = vsel %vm587, %v647, 0.0
      %v684 = vsel %vm588, %v647, 0.0
      %v685 = vsel %vm589, %v651, 0.0
      %v686 = vsel %vm590, %v651, 0.0
      %v687 = vsel %vm591, %v655, 0.0
      %v688 = vsel %vm592, %v655, 0.0
      %v689 = vadd.f32 %v481, %v657
      %v690 = vadd.f32 %v482, %v658
      %v691 = vadd.f32 %v483, %v659
      %v692 = vadd.f32 %v484, %v660
      %v693 = vadd.f32 %v485, %v661
      %v694 = vadd.f32 %v486, %v662
      %v695 = vadd.f32 %v487, %v663
      %v696 = vadd.f32 %v488, %v664
      %v697 = vadd.f32 %v489, %v665
      %v698 = vadd.f32 %v490, %v666
      %v699 = vadd.f32 %v491, %v667
      %v700 = vadd.f32 %v492, %v668
      %v701 = vadd.f32 %v493, %v669
      %v702 = vadd.f32 %v494, %v670
      %v703 = vadd.f32 %v495, %v671
      %v704 = vadd.f32 %v496, %v672
      %v705 = vadd.f32 %v497, %v673
      %v706 = vadd.f32 %v498, %v674
      %v707 = vadd.f32 %v499, %v675
      %v708 = vadd.f32 %v500, %v676
      %v709 = vadd.f32 %v501, %v677
      %v710 = vadd.f32 %v502, %v678
      %v711 = vadd.f32 %v503, %v679
      %v712 = vadd.f32 %v504, %v680
      %v713 = vadd.f32 %v505, %v681
      %v714 = vadd.f32 %v506, %v682
      %v715 = vadd.f32 %v507, %v683
      %v716 = vadd.f32 %v508, %v684
      %v717 = vadd.f32 %v509, %v685
      %v718 = vadd.f32 %v510, %v686
      %v719 = vadd.f32 %v511, %v687
      %v720 = vadd.f32 %v512, %v688
      %721 = vset.pattern.permute.xlu0 2
      %722 = vperm.xlu0 %721, %v250
      %v723 = vpop.permute.xlu0 %722
      %724 = vset.pattern.permute.xlu0 2
      %725 = vperm.xlu0 %724, %v251
      %v726 = vpop.permute.xlu0 %725
      %727 = vset.pattern.permute.xlu0 2
      %728 = vperm.xlu0 %727, %v252
      %v729 = vpop.permute.xlu0 %728
      %730 = vset.pattern.permute.xlu0 2
      %731 = vperm.xlu0 %730, %v253
      %v732 = vpop.permute.xlu0 %731
      %733 = vset.pattern.permute.xlu0 2
      %734 = vperm.xlu0 %733, %v254
      %v735 = vpop.permute.xlu0 %734
      %736 = vset.pattern.permute.xlu0 2
      %737 = vperm.xlu0 %736, %v255
      %v738 = vpop.permute.xlu0 %737
      %739 = vset.pattern.permute.xlu0 2
      %740 = vperm.xlu0 %739, %v256
      %v741 = vpop.permute.xlu0 %740
      %742 = vset.pattern.permute.xlu0 2
      %743 = vperm.xlu0 %742, %v257
      %v744 = vpop.permute.xlu0 %743
      %745 = vset.pattern.permute.xlu0 2
      %746 = vperm.xlu0 %745, %v258
      %v747 = vpop.permute.xlu0 %746
      %748 = vset.pattern.permute.xlu0 2
      %749 = vperm.xlu0 %748, %v259
      %v750 = vpop.permute.xlu0 %749
      %751 = vset.pattern.permute.xlu0 2
      %752 = vperm.xlu0 %751, %v260
      %v753 = vpop.permute.xlu0 %752
      %754 = vset.pattern.permute.xlu0 2
      %755 = vperm.xlu0 %754, %v261
      %v756 = vpop.permute.xlu0 %755
      %757 = vset.pattern.permute.xlu0 2
      %758 = vperm.xlu0 %757, %v262
      %v759 = vpop.permute.xlu0 %758
      %760 = vset.pattern.permute.xlu0 2
      %761 = vperm.xlu0 %760, %v263
      %v762 = vpop.permute.xlu0 %761
      %763 = vset.pattern.permute.xlu0 2
      %764 = vperm.xlu0 %763, %v264
      %v765 = vpop.permute.xlu0 %764
      %766 = vset.pattern.permute.xlu0 2
      %767 = vperm.xlu0 %766, %v265
      %v768 = vpop.permute.xlu0 %767
      %vm769 = vcmp.eq.s32.totalorder %v723, %v287
      %vm770 = vcmp.eq.s32.totalorder %v723, %v288
      %vm771 = vcmp.eq.s32.totalorder %v726, %v287
      %vm772 = vcmp.eq.s32.totalorder %v726, %v288
      %vm773 = vcmp.eq.s32.totalorder %v729, %v287
      %vm774 = vcmp.eq.s32.totalorder %v729, %v288
      %vm775 = vcmp.eq.s32.totalorder %v732, %v287
      %vm776 = vcmp.eq.s32.totalorder %v732, %v288
      %vm777 = vcmp.eq.s32.totalorder %v735, %v287
      %vm778 = vcmp.eq.s32.totalorder %v735, %v288
      %vm779 = vcmp.eq.s32.totalorder %v738, %v287
      %vm780 = vcmp.eq.s32.totalorder %v738, %v288
      %vm781 = vcmp.eq.s32.totalorder %v741, %v287
      %vm782 = vcmp.eq.s32.totalorder %v741, %v288
      %vm783 = vcmp.eq.s32.totalorder %v744, %v287
      %vm784 = vcmp.eq.s32.totalorder %v744, %v288
      %vm785 = vcmp.eq.s32.totalorder %v747, %v287
      %vm786 = vcmp.eq.s32.totalorder %v747, %v288
      %vm787 = vcmp.eq.s32.totalorder %v750, %v287
      %vm788 = vcmp.eq.s32.totalorder %v750, %v288
      %vm789 = vcmp.eq.s32.totalorder %v753, %v287
      %vm790 = vcmp.eq.s32.totalorder %v753, %v288
      %vm791 = vcmp.eq.s32.totalorder %v756, %v287
      %vm792 = vcmp.eq.s32.totalorder %v756, %v288
      %vm793 = vcmp.eq.s32.totalorder %v759, %v287
      %vm794 = vcmp.eq.s32.totalorder %v759, %v288
      %vm795 = vcmp.eq.s32.totalorder %v762, %v287
      %vm796 = vcmp.eq.s32.totalorder %v762, %v288
      %vm797 = vcmp.eq.s32.totalorder %v765, %v287
      %vm798 = vcmp.eq.s32.totalorder %v765, %v288
      %vm799 = vcmp.eq.s32.totalorder %v768, %v287
      %vm800 = vcmp.eq.s32.totalorder %v768, %v288
      %801 = vset.pattern.permute.xlu0 2
      %802 = vperm.xlu0 %801, %v266
      %v803 = vpop.permute.xlu0 %802
      %805 = vset.pattern.permute.xlu0 2
      %806 = vperm.xlu0 %805, %v267
      %v807 = vpop.permute.xlu0 %806
      %809 = vset.pattern.permute.xlu0 2
      %810 = vperm.xlu0 %809, %v268
      %v811 = vpop.permute.xlu0 %810
      %813 = vset.pattern.permute.xlu0 2
      %814 = vperm.xlu0 %813, %v269
      %v815 = vpop.permute.xlu0 %814
      %817 = vset.pattern.permute.xlu0 2
      %818 = vperm.xlu0 %817, %v270
      %v819 = vpop.permute.xlu0 %818
      %821 = vset.pattern.permute.xlu0 2
      %822 = vperm.xlu0 %821, %v271
      %v823 = vpop.permute.xlu0 %822
      %825 = vset.pattern.permute.xlu0 2
      %826 = vperm.xlu0 %825, %v272
      %v827 = vpop.permute.xlu0 %826
      %829 = vset.pattern.permute.xlu0 2
      %830 = vperm.xlu0 %829, %v273
      %v831 = vpop.permute.xlu0 %830
      %833 = vset.pattern.permute.xlu0 2
      %834 = vperm.xlu0 %833, %v274
      %v835 = vpop.permute.xlu0 %834
      %837 = vset.pattern.permute.xlu0 2
      %838 = vperm.xlu0 %837, %v275
      %v839 = vpop.permute.xlu0 %838
      %841 = vset.pattern.permute.xlu0 2
      %842 = vperm.xlu0 %841, %v276
      %v843 = vpop.permute.xlu0 %842
      %845 = vset.pattern.permute.xlu0 2
      %846 = vperm.xlu0 %845, %v277
      %v847 = vpop.permute.xlu0 %846
      %849 = vset.pattern.permute.xlu0 2
      %850 = vperm.xlu0 %849, %v278
      %v851 = vpop.permute.xlu0 %850
      %853 = vset.pattern.permute.xlu0 2
      %854 = vperm.xlu0 %853, %v279
      %v855 = vpop.permute.xlu0 %854
      %857 = vset.pattern.permute.xlu0 2
      %858 = vperm.xlu0 %857, %v280
      %v859 = vpop.permute.xlu0 %858
      %861 = vset.pattern.permute.xlu0 2
      %862 = vperm.xlu0 %861, %v281
      %v863 = vpop.permute.xlu0 %862
      %v865 = vsel %vm769, %v803, 0.0
      %v866 = vsel %vm770, %v803, 0.0
      %v867 = vsel %vm771, %v807, 0.0
      %v868 = vsel %vm772, %v807, 0.0
      %v869 = vsel %vm773, %v811, 0.0
      %v870 = vsel %vm774, %v811, 0.0
      %v871 = vsel %vm775, %v815, 0.0
      %v872 = vsel %vm776, %v815, 0.0
      %v873 = vsel %vm777, %v819, 0.0
      %v874 = vsel %vm778, %v819, 0.0
      %v875 = vsel %vm779, %v823, 0.0
      %v876 = vsel %vm780, %v823, 0.0
      %v877 = vsel %vm781, %v827, 0.0
      %v878 = vsel %vm782, %v827, 0.0
      %v879 = vsel %vm783, %v831, 0.0
      %v880 = vsel %vm784, %v831, 0.0
      %v881 = vsel %vm785, %v835, 0.0
      %v882 = vsel %vm786, %v835, 0.0
      %v883 = vsel %vm787, %v839, 0.0
      %v884 = vsel %vm788, %v839, 0.0
      %v885 = vsel %vm789, %v843, 0.0
      %v886 = vsel %vm790, %v843, 0.0
      %v887 = vsel %vm791, %v847, 0.0
      %v888 = vsel %vm792, %v847, 0.0
      %v889 = vsel %vm793, %v851, 0.0
      %v890 = vsel %vm794, %v851, 0.0
      %v891 = vsel %vm795, %v855, 0.0
      %v892 = vsel %vm796, %v855, 0.0
      %v893 = vsel %vm797, %v859, 0.0
      %v894 = vsel %vm798, %v859, 0.0
      %v895 = vsel %vm799, %v863, 0.0
      %v896 = vsel %vm800, %v863, 0.0
      %v897 = vadd.f32 %v689, %v865
      %v898 = vadd.f32 %v690, %v866
      %v899 = vadd.f32 %v691, %v867
      %v900 = vadd.f32 %v692, %v868
      %v901 = vadd.f32 %v693, %v869
      %v902 = vadd.f32 %v694, %v870
      %v903 = vadd.f32 %v695, %v871
      %v904 = vadd.f32 %v696, %v872
      %v905 = vadd.f32 %v697, %v873
      %v906 = vadd.f32 %v698, %v874
      %v907 = vadd.f32 %v699, %v875
      %v908 = vadd.f32 %v700, %v876
      %v909 = vadd.f32 %v701, %v877
      %v910 = vadd.f32 %v702, %v878
      %v911 = vadd.f32 %v703, %v879
      %v912 = vadd.f32 %v704, %v880
      %v913 = vadd.f32 %v705, %v881
      %v914 = vadd.f32 %v706, %v882
      %v915 = vadd.f32 %v707, %v883
      %v916 = vadd.f32 %v708, %v884
      %v917 = vadd.f32 %v709, %v885
      %v918 = vadd.f32 %v710, %v886
      %v919 = vadd.f32 %v711, %v887
      %v920 = vadd.f32 %v712, %v888
      %v921 = vadd.f32 %v713, %v889
      %v922 = vadd.f32 %v714, %v890
      %v923 = vadd.f32 %v715, %v891
      %v924 = vadd.f32 %v716, %v892
      %v925 = vadd.f32 %v717, %v893
      %v926 = vadd.f32 %v718, %v894
      %v927 = vadd.f32 %v719, %v895
      %v928 = vadd.f32 %v720, %v896
      %929 = vset.pattern.permute.xlu0 3
      %930 = vperm.xlu0 %929, %v250
      %v931 = vpop.permute.xlu0 %930
      %932 = vset.pattern.permute.xlu0 3
      %933 = vperm.xlu0 %932, %v251
      %v934 = vpop.permute.xlu0 %933
      %935 = vset.pattern.permute.xlu0 3
      %936 = vperm.xlu0 %935, %v252
      %v937 = vpop.permute.xlu0 %936
      %938 = vset.pattern.permute.xlu0 3
      %939 = vperm.xlu0 %938, %v253
      %v940 = vpop.permute.xlu0 %939
      %941 = vset.pattern.permute.xlu0 3
      %942 = vperm.xlu0 %941, %v254
      %v943 = vpop.permute.xlu0 %942
      %944 = vset.pattern.permute.xlu0 3
      %945 = vperm.xlu0 %944, %v255
      %v946 = vpop.permute.xlu0 %945
      %947 = vset.pattern.permute.xlu0 3
      %948 = vperm.xlu0 %947, %v256
      %v949 = vpop.permute.xlu0 %948
      %950 = vset.pattern.permute.xlu0 3
      %951 = vperm.xlu0 %950, %v257
      %v952 = vpop.permute.xlu0 %951
      %953 = vset.pattern.permute.xlu0 3
      %954 = vperm.xlu0 %953, %v258
      %v955 = vpop.permute.xlu0 %954
      %956 = vset.pattern.permute.xlu0 3
      %957 = vperm.xlu0 %956, %v259
      %v958 = vpop.permute.xlu0 %957
      %959 = vset.pattern.permute.xlu0 3
      %960 = vperm.xlu0 %959, %v260
      %v961 = vpop.permute.xlu0 %960
      %962 = vset.pattern.permute.xlu0 3
      %963 = vperm.xlu0 %962, %v261
      %v964 = vpop.permute.xlu0 %963
      %965 = vset.pattern.permute.xlu0 3
      %966 = vperm.xlu0 %965, %v262
      %v967 = vpop.permute.xlu0 %966
      %968 = vset.pattern.permute.xlu0 3
      %969 = vperm.xlu0 %968, %v263
      %v970 = vpop.permute.xlu0 %969
      %971 = vset.pattern.permute.xlu0 3
      %972 = vperm.xlu0 %971, %v264
      %v973 = vpop.permute.xlu0 %972
      %974 = vset.pattern.permute.xlu0 3
      %975 = vperm.xlu0 %974, %v265
      %v976 = vpop.permute.xlu0 %975
      %vm977 = vcmp.eq.s32.totalorder %v931, %v287
      %vm978 = vcmp.eq.s32.totalorder %v931, %v288
      %vm979 = vcmp.eq.s32.totalorder %v934, %v287
      %vm980 = vcmp.eq.s32.totalorder %v934, %v288
      %vm981 = vcmp.eq.s32.totalorder %v937, %v287
      %vm982 = vcmp.eq.s32.totalorder %v937, %v288
      %vm983 = vcmp.eq.s32.totalorder %v940, %v287
      %vm984 = vcmp.eq.s32.totalorder %v940, %v288
      %vm985 = vcmp.eq.s32.totalorder %v943, %v287
      %vm986 = vcmp.eq.s32.totalorder %v943, %v288
      %vm987 = vcmp.eq.s32.totalorder %v946, %v287
      %vm988 = vcmp.eq.s32.totalorder %v946, %v288
      %vm989 = vcmp.eq.s32.totalorder %v949, %v287
      %vm990 = vcmp.eq.s32.totalorder %v949, %v288
      %vm991 = vcmp.eq.s32.totalorder %v952, %v287
      %vm992 = vcmp.eq.s32.totalorder %v952, %v288
      %vm993 = vcmp.eq.s32.totalorder %v955, %v287
      %vm994 = vcmp.eq.s32.totalorder %v955, %v288
      %vm995 = vcmp.eq.s32.totalorder %v958, %v287
      %vm996 = vcmp.eq.s32.totalorder %v958, %v288
      %vm997 = vcmp.eq.s32.totalorder %v961, %v287
      %vm998 = vcmp.eq.s32.totalorder %v961, %v288
      %vm999 = vcmp.eq.s32.totalorder %v964, %v287
      %vm1000 = vcmp.eq.s32.totalorder %v964, %v288
      %vm1001 = vcmp.eq.s32.totalorder %v967, %v287
      %vm1002 = vcmp.eq.s32.totalorder %v967, %v288
      %vm1003 = vcmp.eq.s32.totalorder %v970, %v287
      %vm1004 = vcmp.eq.s32.totalorder %v970, %v288
      %vm1005 = vcmp.eq.s32.totalorder %v973, %v287
      %vm1006 = vcmp.eq.s32.totalorder %v973, %v288
      %vm1007 = vcmp.eq.s32.totalorder %v976, %v287
      %vm1008 = vcmp.eq.s32.totalorder %v976, %v288
      %1009 = vset.pattern.permute.xlu0 3
      %1010 = vperm.xlu0 %1009, %v266
      %v1011 = vpop.permute.xlu0 %1010
      %1013 = vset.pattern.permute.xlu0 3
      %1014 = vperm.xlu0 %1013, %v267
      %v1015 = vpop.permute.xlu0 %1014
      %1017 = vset.pattern.permute.xlu0 3
      %1018 = vperm.xlu0 %1017, %v268
      %v1019 = vpop.permute.xlu0 %1018
      %1021 = vset.pattern.permute.xlu0 3
      %1022 = vperm.xlu0 %1021, %v269
      %v1023 = vpop.permute.xlu0 %1022
      %1025 = vset.pattern.permute.xlu0 3
      %1026 = vperm.xlu0 %1025, %v270
      %v1027 = vpop.permute.xlu0 %1026
      %1029 = vset.pattern.permute.xlu0 3
      %1030 = vperm.xlu0 %1029, %v271
      %v1031 = vpop.permute.xlu0 %1030
      %1033 = vset.pattern.permute.xlu0 3
      %1034 = vperm.xlu0 %1033, %v272
      %v1035 = vpop.permute.xlu0 %1034
      %1037 = vset.pattern.permute.xlu0 3
      %1038 = vperm.xlu0 %1037, %v273
      %v1039 = vpop.permute.xlu0 %1038
      %1041 = vset.pattern.permute.xlu0 3
      %1042 = vperm.xlu0 %1041, %v274
      %v1043 = vpop.permute.xlu0 %1042
      %1045 = vset.pattern.permute.xlu0 3
      %1046 = vperm.xlu0 %1045, %v275
      %v1047 = vpop.permute.xlu0 %1046
      %1049 = vset.pattern.permute.xlu0 3
      %1050 = vperm.xlu0 %1049, %v276
      %v1051 = vpop.permute.xlu0 %1050
      %1053 = vset.pattern.permute.xlu0 3
      %1054 = vperm.xlu0 %1053, %v277
      %v1055 = vpop.permute.xlu0 %1054
      %1057 = vset.pattern.permute.xlu0 3
      %1058 = vperm.xlu0 %1057, %v278
      %v1059 = vpop.permute.xlu0 %1058
      %1061 = vset.pattern.permute.xlu0 3
      %1062 = vperm.xlu0 %1061, %v279
      %v1063 = vpop.permute.xlu0 %1062
      %1065 = vset.pattern.permute.xlu0 3
      %1066 = vperm.xlu0 %1065, %v280
      %v1067 = vpop.permute.xlu0 %1066
      %1069 = vset.pattern.permute.xlu0 3
      %1070 = vperm.xlu0 %1069, %v281
      %v1071 = vpop.permute.xlu0 %1070
      %v1073 = vsel %vm977, %v1011, 0.0
      %v1074 = vsel %vm978, %v1011, 0.0
      %v1075 = vsel %vm979, %v1015, 0.0
      %v1076 = vsel %vm980, %v1015, 0.0
      %v1077 = vsel %vm981, %v1019, 0.0
      %v1078 = vsel %vm982, %v1019, 0.0
      %v1079 = vsel %vm983, %v1023, 0.0
      %v1080 = vsel %vm984, %v1023, 0.0
      %v1081 = vsel %vm985, %v1027, 0.0
      %v1082 = vsel %vm986, %v1027, 0.0
      %v1083 = vsel %vm987, %v1031, 0.0
      %v1084 = vsel %vm988, %v1031, 0.0
      %v1085 = vsel %vm989, %v1035, 0.0
      %v1086 = vsel %vm990, %v1035, 0.0
      %v1087 = vsel %vm991, %v1039, 0.0
      %v1088 = vsel %vm992, %v1039, 0.0
      %v1089 = vsel %vm993, %v1043, 0.0
      %v1090 = vsel %vm994, %v1043, 0.0
      %v1091 = vsel %vm995, %v1047, 0.0
      %v1092 = vsel %vm996, %v1047, 0.0
      %v1093 = vsel %vm997, %v1051, 0.0
      %v1094 = vsel %vm998, %v1051, 0.0
      %v1095 = vsel %vm999, %v1055, 0.0
      %v1096 = vsel %vm1000, %v1055, 0.0
      %v1097 = vsel %vm1001, %v1059, 0.0
      %v1098 = vsel %vm1002, %v1059, 0.0
      %v1099 = vsel %vm1003, %v1063, 0.0
      %v1100 = vsel %vm1004, %v1063, 0.0
      %v1101 = vsel %vm1005, %v1067, 0.0
      %v1102 = vsel %vm1006, %v1067, 0.0
      %v1103 = vsel %vm1007, %v1071, 0.0
      %v1104 = vsel %vm1008, %v1071, 0.0
      %v1105 = vadd.f32 %v897, %v1073
      %v1106 = vadd.f32 %v898, %v1074
      %v1107 = vadd.f32 %v899, %v1075
      %v1108 = vadd.f32 %v900, %v1076
      %v1109 = vadd.f32 %v901, %v1077
      %v1110 = vadd.f32 %v902, %v1078
      %v1111 = vadd.f32 %v903, %v1079
      %v1112 = vadd.f32 %v904, %v1080
      %v1113 = vadd.f32 %v905, %v1081
      %v1114 = vadd.f32 %v906, %v1082
      %v1115 = vadd.f32 %v907, %v1083
      %v1116 = vadd.f32 %v908, %v1084
      %v1117 = vadd.f32 %v909, %v1085
      %v1118 = vadd.f32 %v910, %v1086
      %v1119 = vadd.f32 %v911, %v1087
      %v1120 = vadd.f32 %v912, %v1088
      %v1121 = vadd.f32 %v913, %v1089
      %v1122 = vadd.f32 %v914, %v1090
      %v1123 = vadd.f32 %v915, %v1091
      %v1124 = vadd.f32 %v916, %v1092
      %v1125 = vadd.f32 %v917, %v1093
      %v1126 = vadd.f32 %v918, %v1094
      %v1127 = vadd.f32 %v919, %v1095
      %v1128 = vadd.f32 %v920, %v1096
      %v1129 = vadd.f32 %v921, %v1097
      %v1130 = vadd.f32 %v922, %v1098
      %v1131 = vadd.f32 %v923, %v1099
      %v1132 = vadd.f32 %v924, %v1100
      %v1133 = vadd.f32 %v925, %v1101
      %v1134 = vadd.f32 %v926, %v1102
      %v1135 = vadd.f32 %v927, %v1103
      %v1136 = vadd.f32 %v928, %v1104
      %1137 = vset.pattern.permute.xlu0 4
      %1138 = vperm.xlu0 %1137, %v250
      %v1139 = vpop.permute.xlu0 %1138
      %1140 = vset.pattern.permute.xlu0 4
      %1141 = vperm.xlu0 %1140, %v251
      %v1142 = vpop.permute.xlu0 %1141
      %1143 = vset.pattern.permute.xlu0 4
      %1144 = vperm.xlu0 %1143, %v252
      %v1145 = vpop.permute.xlu0 %1144
      %1146 = vset.pattern.permute.xlu0 4
      %1147 = vperm.xlu0 %1146, %v253
      %v1148 = vpop.permute.xlu0 %1147
      %1149 = vset.pattern.permute.xlu0 4
      %1150 = vperm.xlu0 %1149, %v254
      %v1151 = vpop.permute.xlu0 %1150
      %1152 = vset.pattern.permute.xlu0 4
      %1153 = vperm.xlu0 %1152, %v255
      %v1154 = vpop.permute.xlu0 %1153
      %1155 = vset.pattern.permute.xlu0 4
      %1156 = vperm.xlu0 %1155, %v256
      %v1157 = vpop.permute.xlu0 %1156
      %1158 = vset.pattern.permute.xlu0 4
      %1159 = vperm.xlu0 %1158, %v257
      %v1160 = vpop.permute.xlu0 %1159
      %1161 = vset.pattern.permute.xlu0 4
      %1162 = vperm.xlu0 %1161, %v258
      %v1163 = vpop.permute.xlu0 %1162
      %1164 = vset.pattern.permute.xlu0 4
      %1165 = vperm.xlu0 %1164, %v259
      %v1166 = vpop.permute.xlu0 %1165
      %1167 = vset.pattern.permute.xlu0 4
      %1168 = vperm.xlu0 %1167, %v260
      %v1169 = vpop.permute.xlu0 %1168
      %1170 = vset.pattern.permute.xlu0 4
      %1171 = vperm.xlu0 %1170, %v261
      %v1172 = vpop.permute.xlu0 %1171
      %1173 = vset.pattern.permute.xlu0 4
      %1174 = vperm.xlu0 %1173, %v262
      %v1175 = vpop.permute.xlu0 %1174
      %1176 = vset.pattern.permute.xlu0 4
      %1177 = vperm.xlu0 %1176, %v263
      %v1178 = vpop.permute.xlu0 %1177
      %1179 = vset.pattern.permute.xlu0 4
      %1180 = vperm.xlu0 %1179, %v264
      %v1181 = vpop.permute.xlu0 %1180
      %1182 = vset.pattern.permute.xlu0 4
      %1183 = vperm.xlu0 %1182, %v265
      %v1184 = vpop.permute.xlu0 %1183
      %vm1185 = vcmp.eq.s32.totalorder %v1139, %v287
      %vm1186 = vcmp.eq.s32.totalorder %v1139, %v288
      %vm1187 = vcmp.eq.s32.totalorder %v1142, %v287
      %vm1188 = vcmp.eq.s32.totalorder %v1142, %v288
      %vm1189 = vcmp.eq.s32.totalorder %v1145, %v287
      %vm1190 = vcmp.eq.s32.totalorder %v1145, %v288
      %vm1191 = vcmp.eq.s32.totalorder %v1148, %v287
      %vm1192 = vcmp.eq.s32.totalorder %v1148, %v288
      %vm1193 = vcmp.eq.s32.totalorder %v1151, %v287
      %vm1194 = vcmp.eq.s32.totalorder %v1151, %v288
      %vm1195 = vcmp.eq.s32.totalorder %v1154, %v287
      %vm1196 = vcmp.eq.s32.totalorder %v1154, %v288
      %vm1197 = vcmp.eq.s32.totalorder %v1157, %v287
      %vm1198 = vcmp.eq.s32.totalorder %v1157, %v288
      %vm1199 = vcmp.eq.s32.totalorder %v1160, %v287
      %vm1200 = vcmp.eq.s32.totalorder %v1160, %v288
      %vm1201 = vcmp.eq.s32.totalorder %v1163, %v287
      %vm1202 = vcmp.eq.s32.totalorder %v1163, %v288
      %vm1203 = vcmp.eq.s32.totalorder %v1166, %v287
      %vm1204 = vcmp.eq.s32.totalorder %v1166, %v288
      %vm1205 = vcmp.eq.s32.totalorder %v1169, %v287
      %vm1206 = vcmp.eq.s32.totalorder %v1169, %v288
      %vm1207 = vcmp.eq.s32.totalorder %v1172, %v287
      %vm1208 = vcmp.eq.s32.totalorder %v1172, %v288
      %vm1209 = vcmp.eq.s32.totalorder %v1175, %v287
      %vm1210 = vcmp.eq.s32.totalorder %v1175, %v288
      %vm1211 = vcmp.eq.s32.totalorder %v1178, %v287
      %vm1212 = vcmp.eq.s32.totalorder %v1178, %v288
      %vm1213 = vcmp.eq.s32.totalorder %v1181, %v287
      %vm1214 = vcmp.eq.s32.totalorder %v1181, %v288
      %vm1215 = vcmp.eq.s32.totalorder %v1184, %v287
      %vm1216 = vcmp.eq.s32.totalorder %v1184, %v288
      %1217 = vset.pattern.permute.xlu0 4
      %1218 = vperm.xlu0 %1217, %v266
      %v1219 = vpop.permute.xlu0 %1218
      %1221 = vset.pattern.permute.xlu0 4
      %1222 = vperm.xlu0 %1221, %v267
      %v1223 = vpop.permute.xlu0 %1222
      %1225 = vset.pattern.permute.xlu0 4
      %1226 = vperm.xlu0 %1225, %v268
      %v1227 = vpop.permute.xlu0 %1226
      %1229 = vset.pattern.permute.xlu0 4
      %1230 = vperm.xlu0 %1229, %v269
      %v1231 = vpop.permute.xlu0 %1230
      %1233 = vset.pattern.permute.xlu0 4
      %1234 = vperm.xlu0 %1233, %v270
      %v1235 = vpop.permute.xlu0 %1234
      %1237 = vset.pattern.permute.xlu0 4
      %1238 = vperm.xlu0 %1237, %v271
      %v1239 = vpop.permute.xlu0 %1238
      %1241 = vset.pattern.permute.xlu0 4
      %1242 = vperm.xlu0 %1241, %v272
      %v1243 = vpop.permute.xlu0 %1242
      %1245 = vset.pattern.permute.xlu0 4
      %1246 = vperm.xlu0 %1245, %v273
      %v1247 = vpop.permute.xlu0 %1246
      %1249 = vset.pattern.permute.xlu0 4
      %1250 = vperm.xlu0 %1249, %v274
      %v1251 = vpop.permute.xlu0 %1250
      %1253 = vset.pattern.permute.xlu0 4
      %1254 = vperm.xlu0 %1253, %v275
      %v1255 = vpop.permute.xlu0 %1254
      %1257 = vset.pattern.permute.xlu0 4
      %1258 = vperm.xlu0 %1257, %v276
      %v1259 = vpop.permute.xlu0 %1258
      %1261 = vset.pattern.permute.xlu0 4
      %1262 = vperm.xlu0 %1261, %v277
      %v1263 = vpop.permute.xlu0 %1262
      %1265 = vset.pattern.permute.xlu0 4
      %1266 = vperm.xlu0 %1265, %v278
      %v1267 = vpop.permute.xlu0 %1266
      %1269 = vset.pattern.permute.xlu0 4
      %1270 = vperm.xlu0 %1269, %v279
      %v1271 = vpop.permute.xlu0 %1270
      %1273 = vset.pattern.permute.xlu0 4
      %1274 = vperm.xlu0 %1273, %v280
      %v1275 = vpop.permute.xlu0 %1274
      %1277 = vset.pattern.permute.xlu0 4
      %1278 = vperm.xlu0 %1277, %v281
      %v1279 = vpop.permute.xlu0 %1278
      %v1281 = vsel %vm1185, %v1219, 0.0
      %v1282 = vsel %vm1186, %v1219, 0.0
      %v1283 = vsel %vm1187, %v1223, 0.0
      %v1284 = vsel %vm1188, %v1223, 0.0
      %v1285 = vsel %vm1189, %v1227, 0.0
      %v1286 = vsel %vm1190, %v1227, 0.0
      %v1287 = vsel %vm1191, %v1231, 0.0
      %v1288 = vsel %vm1192, %v1231, 0.0
      %v1289 = vsel %vm1193, %v1235, 0.0
      %v1290 = vsel %vm1194, %v1235, 0.0
      %v1291 = vsel %vm1195, %v1239, 0.0
      %v1292 = vsel %vm1196, %v1239, 0.0
      %v1293 = vsel %vm1197, %v1243, 0.0
      %v1294 = vsel %vm1198, %v1243, 0.0
      %v1295 = vsel %vm1199, %v1247, 0.0
      %v1296 = vsel %vm1200, %v1247, 0.0
      %v1297 = vsel %vm1201, %v1251, 0.0
      %v1298 = vsel %vm1202, %v1251, 0.0
      %v1299 = vsel %vm1203, %v1255, 0.0
      %v1300 = vsel %vm1204, %v1255, 0.0
      %v1301 = vsel %vm1205, %v1259, 0.0
      %v1302 = vsel %vm1206, %v1259, 0.0
      %v1303 = vsel %vm1207, %v1263, 0.0
      %v1304 = vsel %vm1208, %v1263, 0.0
      %v1305 = vsel %vm1209, %v1267, 0.0
      %v1306 = vsel %vm1210, %v1267, 0.0
      %v1307 = vsel %vm1211, %v1271, 0.0
      %v1308 = vsel %vm1212, %v1271, 0.0
      %v1309 = vsel %vm1213, %v1275, 0.0
      %v1310 = vsel %vm1214, %v1275, 0.0
      %v1311 = vsel %vm1215, %v1279, 0.0
      %v1312 = vsel %vm1216, %v1279, 0.0
      %v1313 = vadd.f32 %v1105, %v1281
      %v1314 = vadd.f32 %v1106, %v1282
      %v1315 = vadd.f32 %v1107, %v1283
      %v1316 = vadd.f32 %v1108, %v1284
      %v1317 = vadd.f32 %v1109, %v1285
      %v1318 = vadd.f32 %v1110, %v1286
      %v1319 = vadd.f32 %v1111, %v1287
      %v1320 = vadd.f32 %v1112, %v1288
      %v1321 = vadd.f32 %v1113, %v1289
      %v1322 = vadd.f32 %v1114, %v1290
      %v1323 = vadd.f32 %v1115, %v1291
      %v1324 = vadd.f32 %v1116, %v1292
      %v1325 = vadd.f32 %v1117, %v1293
      %v1326 = vadd.f32 %v1118, %v1294
      %v1327 = vadd.f32 %v1119, %v1295
      %v1328 = vadd.f32 %v1120, %v1296
      %v1329 = vadd.f32 %v1121, %v1297
      %v1330 = vadd.f32 %v1122, %v1298
      %v1331 = vadd.f32 %v1123, %v1299
      %v1332 = vadd.f32 %v1124, %v1300
      %v1333 = vadd.f32 %v1125, %v1301
      %v1334 = vadd.f32 %v1126, %v1302
      %v1335 = vadd.f32 %v1127, %v1303
      %v1336 = vadd.f32 %v1128, %v1304
      %v1337 = vadd.f32 %v1129, %v1305
      %v1338 = vadd.f32 %v1130, %v1306
      %v1339 = vadd.f32 %v1131, %v1307
      %v1340 = vadd.f32 %v1132, %v1308
      %v1341 = vadd.f32 %v1133, %v1309
      %v1342 = vadd.f32 %v1134, %v1310
      %v1343 = vadd.f32 %v1135, %v1311
      %v1344 = vadd.f32 %v1136, %v1312
      %1345 = vset.pattern.permute.xlu0 5
      %1346 = vperm.xlu0 %1345, %v250
      %v1347 = vpop.permute.xlu0 %1346
      %1348 = vset.pattern.permute.xlu0 5
      %1349 = vperm.xlu0 %1348, %v251
      %v1350 = vpop.permute.xlu0 %1349
      %1351 = vset.pattern.permute.xlu0 5
      %1352 = vperm.xlu0 %1351, %v252
      %v1353 = vpop.permute.xlu0 %1352
      %1354 = vset.pattern.permute.xlu0 5
      %1355 = vperm.xlu0 %1354, %v253
      %v1356 = vpop.permute.xlu0 %1355
      %1357 = vset.pattern.permute.xlu0 5
      %1358 = vperm.xlu0 %1357, %v254
      %v1359 = vpop.permute.xlu0 %1358
      %1360 = vset.pattern.permute.xlu0 5
      %1361 = vperm.xlu0 %1360, %v255
      %v1362 = vpop.permute.xlu0 %1361
      %1363 = vset.pattern.permute.xlu0 5
      %1364 = vperm.xlu0 %1363, %v256
      %v1365 = vpop.permute.xlu0 %1364
      %1366 = vset.pattern.permute.xlu0 5
      %1367 = vperm.xlu0 %1366, %v257
      %v1368 = vpop.permute.xlu0 %1367
      %1369 = vset.pattern.permute.xlu0 5
      %1370 = vperm.xlu0 %1369, %v258
      %v1371 = vpop.permute.xlu0 %1370
      %1372 = vset.pattern.permute.xlu0 5
      %1373 = vperm.xlu0 %1372, %v259
      %v1374 = vpop.permute.xlu0 %1373
      %1375 = vset.pattern.permute.xlu0 5
      %1376 = vperm.xlu0 %1375, %v260
      %v1377 = vpop.permute.xlu0 %1376
      %1378 = vset.pattern.permute.xlu0 5
      %1379 = vperm.xlu0 %1378, %v261
      %v1380 = vpop.permute.xlu0 %1379
      %1381 = vset.pattern.permute.xlu0 5
      %1382 = vperm.xlu0 %1381, %v262
      %v1383 = vpop.permute.xlu0 %1382
      %1384 = vset.pattern.permute.xlu0 5
      %1385 = vperm.xlu0 %1384, %v263
      %v1386 = vpop.permute.xlu0 %1385
      %1387 = vset.pattern.permute.xlu0 5
      %1388 = vperm.xlu0 %1387, %v264
      %v1389 = vpop.permute.xlu0 %1388
      %1390 = vset.pattern.permute.xlu0 5
      %1391 = vperm.xlu0 %1390, %v265
      %v1392 = vpop.permute.xlu0 %1391
      %vm1393 = vcmp.eq.s32.totalorder %v1347, %v287
      %vm1394 = vcmp.eq.s32.totalorder %v1347, %v288
      %vm1395 = vcmp.eq.s32.totalorder %v1350, %v287
      %vm1396 = vcmp.eq.s32.totalorder %v1350, %v288
      %vm1397 = vcmp.eq.s32.totalorder %v1353, %v287
      %vm1398 = vcmp.eq.s32.totalorder %v1353, %v288
      %vm1399 = vcmp.eq.s32.totalorder %v1356, %v287
      %vm1400 = vcmp.eq.s32.totalorder %v1356, %v288
      %vm1401 = vcmp.eq.s32.totalorder %v1359, %v287
      %vm1402 = vcmp.eq.s32.totalorder %v1359, %v288
      %vm1403 = vcmp.eq.s32.totalorder %v1362, %v287
      %vm1404 = vcmp.eq.s32.totalorder %v1362, %v288
      %vm1405 = vcmp.eq.s32.totalorder %v1365, %v287
      %vm1406 = vcmp.eq.s32.totalorder %v1365, %v288
      %vm1407 = vcmp.eq.s32.totalorder %v1368, %v287
      %vm1408 = vcmp.eq.s32.totalorder %v1368, %v288
      %vm1409 = vcmp.eq.s32.totalorder %v1371, %v287
      %vm1410 = vcmp.eq.s32.totalorder %v1371, %v288
      %vm1411 = vcmp.eq.s32.totalorder %v1374, %v287
      %vm1412 = vcmp.eq.s32.totalorder %v1374, %v288
      %vm1413 = vcmp.eq.s32.totalorder %v1377, %v287
      %vm1414 = vcmp.eq.s32.totalorder %v1377, %v288
      %vm1415 = vcmp.eq.s32.totalorder %v1380, %v287
      %vm1416 = vcmp.eq.s32.totalorder %v1380, %v288
      %vm1417 = vcmp.eq.s32.totalorder %v1383, %v287
      %vm1418 = vcmp.eq.s32.totalorder %v1383, %v288
      %vm1419 = vcmp.eq.s32.totalorder %v1386, %v287
      %vm1420 = vcmp.eq.s32.totalorder %v1386, %v288
      %vm1421 = vcmp.eq.s32.totalorder %v1389, %v287
      %vm1422 = vcmp.eq.s32.totalorder %v1389, %v288
      %vm1423 = vcmp.eq.s32.totalorder %v1392, %v287
      %vm1424 = vcmp.eq.s32.totalorder %v1392, %v288
      %1425 = vset.pattern.permute.xlu0 5
      %1426 = vperm.xlu0 %1425, %v266
      %v1427 = vpop.permute.xlu0 %1426
      %1429 = vset.pattern.permute.xlu0 5
      %1430 = vperm.xlu0 %1429, %v267
      %v1431 = vpop.permute.xlu0 %1430
      %1433 = vset.pattern.permute.xlu0 5
      %1434 = vperm.xlu0 %1433, %v268
      %v1435 = vpop.permute.xlu0 %1434
      %1437 = vset.pattern.permute.xlu0 5
      %1438 = vperm.xlu0 %1437, %v269
      %v1439 = vpop.permute.xlu0 %1438
      %1441 = vset.pattern.permute.xlu0 5
      %1442 = vperm.xlu0 %1441, %v270
      %v1443 = vpop.permute.xlu0 %1442
      %1445 = vset.pattern.permute.xlu0 5
      %1446 = vperm.xlu0 %1445, %v271
      %v1447 = vpop.permute.xlu0 %1446
      %1449 = vset.pattern.permute.xlu0 5
      %1450 = vperm.xlu0 %1449, %v272
      %v1451 = vpop.permute.xlu0 %1450
      %1453 = vset.pattern.permute.xlu0 5
      %1454 = vperm.xlu0 %1453, %v273
      %v1455 = vpop.permute.xlu0 %1454
      %1457 = vset.pattern.permute.xlu0 5
      %1458 = vperm.xlu0 %1457, %v274
      %v1459 = vpop.permute.xlu0 %1458
      %1461 = vset.pattern.permute.xlu0 5
      %1462 = vperm.xlu0 %1461, %v275
      %v1463 = vpop.permute.xlu0 %1462
      %1465 = vset.pattern.permute.xlu0 5
      %1466 = vperm.xlu0 %1465, %v276
      %v1467 = vpop.permute.xlu0 %1466
      %1469 = vset.pattern.permute.xlu0 5
      %1470 = vperm.xlu0 %1469, %v277
      %v1471 = vpop.permute.xlu0 %1470
      %1473 = vset.pattern.permute.xlu0 5
      %1474 = vperm.xlu0 %1473, %v278
      %v1475 = vpop.permute.xlu0 %1474
      %1477 = vset.pattern.permute.xlu0 5
      %1478 = vperm.xlu0 %1477, %v279
      %v1479 = vpop.permute.xlu0 %1478
      %1481 = vset.pattern.permute.xlu0 5
      %1482 = vperm.xlu0 %1481, %v280
      %v1483 = vpop.permute.xlu0 %1482
      %1485 = vset.pattern.permute.xlu0 5
      %1486 = vperm.xlu0 %1485, %v281
      %v1487 = vpop.permute.xlu0 %1486
      %v1489 = vsel %vm1393, %v1427, 0.0
      %v1490 = vsel %vm1394, %v1427, 0.0
      %v1491 = vsel %vm1395, %v1431, 0.0
      %v1492 = vsel %vm1396, %v1431, 0.0
      %v1493 = vsel %vm1397, %v1435, 0.0
      %v1494 = vsel %vm1398, %v1435, 0.0
      %v1495 = vsel %vm1399, %v1439, 0.0
      %v1496 = vsel %vm1400, %v1439, 0.0
      %v1497 = vsel %vm1401, %v1443, 0.0
      %v1498 = vsel %vm1402, %v1443, 0.0
      %v1499 = vsel %vm1403, %v1447, 0.0
      %v1500 = vsel %vm1404, %v1447, 0.0
      %v1501 = vsel %vm1405, %v1451, 0.0
      %v1502 = vsel %vm1406, %v1451, 0.0
      %v1503 = vsel %vm1407, %v1455, 0.0
      %v1504 = vsel %vm1408, %v1455, 0.0
      %v1505 = vsel %vm1409, %v1459, 0.0
      %v1506 = vsel %vm1410, %v1459, 0.0
      %v1507 = vsel %vm1411, %v1463, 0.0
      %v1508 = vsel %vm1412, %v1463, 0.0
      %v1509 = vsel %vm1413, %v1467, 0.0
      %v1510 = vsel %vm1414, %v1467, 0.0
      %v1511 = vsel %vm1415, %v1471, 0.0
      %v1512 = vsel %vm1416, %v1471, 0.0
      %v1513 = vsel %vm1417, %v1475, 0.0
      %v1514 = vsel %vm1418, %v1475, 0.0
      %v1515 = vsel %vm1419, %v1479, 0.0
      %v1516 = vsel %vm1420, %v1479, 0.0
      %v1517 = vsel %vm1421, %v1483, 0.0
      %v1518 = vsel %vm1422, %v1483, 0.0
      %v1519 = vsel %vm1423, %v1487, 0.0
      %v1520 = vsel %vm1424, %v1487, 0.0
      %v1521 = vadd.f32 %v1313, %v1489
      %v1522 = vadd.f32 %v1314, %v1490
      %v1523 = vadd.f32 %v1315, %v1491
      %v1524 = vadd.f32 %v1316, %v1492
      %v1525 = vadd.f32 %v1317, %v1493
      %v1526 = vadd.f32 %v1318, %v1494
      %v1527 = vadd.f32 %v1319, %v1495
      %v1528 = vadd.f32 %v1320, %v1496
      %v1529 = vadd.f32 %v1321, %v1497
      %v1530 = vadd.f32 %v1322, %v1498
      %v1531 = vadd.f32 %v1323, %v1499
      %v1532 = vadd.f32 %v1324, %v1500
      %v1533 = vadd.f32 %v1325, %v1501
      %v1534 = vadd.f32 %v1326, %v1502
      %v1535 = vadd.f32 %v1327, %v1503
      %v1536 = vadd.f32 %v1328, %v1504
      %v1537 = vadd.f32 %v1329, %v1505
      %v1538 = vadd.f32 %v1330, %v1506
      %v1539 = vadd.f32 %v1331, %v1507
      %v1540 = vadd.f32 %v1332, %v1508
      %v1541 = vadd.f32 %v1333, %v1509
      %v1542 = vadd.f32 %v1334, %v1510
      %v1543 = vadd.f32 %v1335, %v1511
      %v1544 = vadd.f32 %v1336, %v1512
      %v1545 = vadd.f32 %v1337, %v1513
      %v1546 = vadd.f32 %v1338, %v1514
      %v1547 = vadd.f32 %v1339, %v1515
      %v1548 = vadd.f32 %v1340, %v1516
      %v1549 = vadd.f32 %v1341, %v1517
      %v1550 = vadd.f32 %v1342, %v1518
      %v1551 = vadd.f32 %v1343, %v1519
      %v1552 = vadd.f32 %v1344, %v1520
      %1553 = vset.pattern.permute.xlu0 6
      %1554 = vperm.xlu0 %1553, %v250
      %v1555 = vpop.permute.xlu0 %1554
      %1556 = vset.pattern.permute.xlu0 6
      %1557 = vperm.xlu0 %1556, %v251
      %v1558 = vpop.permute.xlu0 %1557
      %1559 = vset.pattern.permute.xlu0 6
      %1560 = vperm.xlu0 %1559, %v252
      %v1561 = vpop.permute.xlu0 %1560
      %1562 = vset.pattern.permute.xlu0 6
      %1563 = vperm.xlu0 %1562, %v253
      %v1564 = vpop.permute.xlu0 %1563
      %1565 = vset.pattern.permute.xlu0 6
      %1566 = vperm.xlu0 %1565, %v254
      %v1567 = vpop.permute.xlu0 %1566
      %1568 = vset.pattern.permute.xlu0 6
      %1569 = vperm.xlu0 %1568, %v255
      %v1570 = vpop.permute.xlu0 %1569
      %1571 = vset.pattern.permute.xlu0 6
      %1572 = vperm.xlu0 %1571, %v256
      %v1573 = vpop.permute.xlu0 %1572
      %1574 = vset.pattern.permute.xlu0 6
      %1575 = vperm.xlu0 %1574, %v257
      %v1576 = vpop.permute.xlu0 %1575
      %1577 = vset.pattern.permute.xlu0 6
      %1578 = vperm.xlu0 %1577, %v258
      %v1579 = vpop.permute.xlu0 %1578
      %1580 = vset.pattern.permute.xlu0 6
      %1581 = vperm.xlu0 %1580, %v259
      %v1582 = vpop.permute.xlu0 %1581
      %1583 = vset.pattern.permute.xlu0 6
      %1584 = vperm.xlu0 %1583, %v260
      %v1585 = vpop.permute.xlu0 %1584
      %1586 = vset.pattern.permute.xlu0 6
      %1587 = vperm.xlu0 %1586, %v261
      %v1588 = vpop.permute.xlu0 %1587
      %1589 = vset.pattern.permute.xlu0 6
      %1590 = vperm.xlu0 %1589, %v262
      %v1591 = vpop.permute.xlu0 %1590
      %1592 = vset.pattern.permute.xlu0 6
      %1593 = vperm.xlu0 %1592, %v263
      %v1594 = vpop.permute.xlu0 %1593
      %1595 = vset.pattern.permute.xlu0 6
      %1596 = vperm.xlu0 %1595, %v264
      %v1597 = vpop.permute.xlu0 %1596
      %1598 = vset.pattern.permute.xlu0 6
      %1599 = vperm.xlu0 %1598, %v265
      %v1600 = vpop.permute.xlu0 %1599
      %vm1601 = vcmp.eq.s32.totalorder %v1555, %v287
      %vm1602 = vcmp.eq.s32.totalorder %v1555, %v288
      %vm1603 = vcmp.eq.s32.totalorder %v1558, %v287
      %vm1604 = vcmp.eq.s32.totalorder %v1558, %v288
      %vm1605 = vcmp.eq.s32.totalorder %v1561, %v287
      %vm1606 = vcmp.eq.s32.totalorder %v1561, %v288
      %vm1607 = vcmp.eq.s32.totalorder %v1564, %v287
      %vm1608 = vcmp.eq.s32.totalorder %v1564, %v288
      %vm1609 = vcmp.eq.s32.totalorder %v1567, %v287
      %vm1610 = vcmp.eq.s32.totalorder %v1567, %v288
      %vm1611 = vcmp.eq.s32.totalorder %v1570, %v287
      %vm1612 = vcmp.eq.s32.totalorder %v1570, %v288
      %vm1613 = vcmp.eq.s32.totalorder %v1573, %v287
      %vm1614 = vcmp.eq.s32.totalorder %v1573, %v288
      %vm1615 = vcmp.eq.s32.totalorder %v1576, %v287
      %vm1616 = vcmp.eq.s32.totalorder %v1576, %v288
      %vm1617 = vcmp.eq.s32.totalorder %v1579, %v287
      %vm1618 = vcmp.eq.s32.totalorder %v1579, %v288
      %vm1619 = vcmp.eq.s32.totalorder %v1582, %v287
      %vm1620 = vcmp.eq.s32.totalorder %v1582, %v288
      %vm1621 = vcmp.eq.s32.totalorder %v1585, %v287
      %vm1622 = vcmp.eq.s32.totalorder %v1585, %v288
      %vm1623 = vcmp.eq.s32.totalorder %v1588, %v287
      %vm1624 = vcmp.eq.s32.totalorder %v1588, %v288
      %vm1625 = vcmp.eq.s32.totalorder %v1591, %v287
      %vm1626 = vcmp.eq.s32.totalorder %v1591, %v288
      %vm1627 = vcmp.eq.s32.totalorder %v1594, %v287
      %vm1628 = vcmp.eq.s32.totalorder %v1594, %v288
      %vm1629 = vcmp.eq.s32.totalorder %v1597, %v287
      %vm1630 = vcmp.eq.s32.totalorder %v1597, %v288
      %vm1631 = vcmp.eq.s32.totalorder %v1600, %v287
      %vm1632 = vcmp.eq.s32.totalorder %v1600, %v288
      %1633 = vset.pattern.permute.xlu0 6
      %1634 = vperm.xlu0 %1633, %v266
      %v1635 = vpop.permute.xlu0 %1634
      %1637 = vset.pattern.permute.xlu0 6
      %1638 = vperm.xlu0 %1637, %v267
      %v1639 = vpop.permute.xlu0 %1638
      %1641 = vset.pattern.permute.xlu0 6
      %1642 = vperm.xlu0 %1641, %v268
      %v1643 = vpop.permute.xlu0 %1642
      %1645 = vset.pattern.permute.xlu0 6
      %1646 = vperm.xlu0 %1645, %v269
      %v1647 = vpop.permute.xlu0 %1646
      %1649 = vset.pattern.permute.xlu0 6
      %1650 = vperm.xlu0 %1649, %v270
      %v1651 = vpop.permute.xlu0 %1650
      %1653 = vset.pattern.permute.xlu0 6
      %1654 = vperm.xlu0 %1653, %v271
      %v1655 = vpop.permute.xlu0 %1654
      %1657 = vset.pattern.permute.xlu0 6
      %1658 = vperm.xlu0 %1657, %v272
      %v1659 = vpop.permute.xlu0 %1658
      %1661 = vset.pattern.permute.xlu0 6
      %1662 = vperm.xlu0 %1661, %v273
      %v1663 = vpop.permute.xlu0 %1662
      %1665 = vset.pattern.permute.xlu0 6
      %1666 = vperm.xlu0 %1665, %v274
      %v1667 = vpop.permute.xlu0 %1666
      %1669 = vset.pattern.permute.xlu0 6
      %1670 = vperm.xlu0 %1669, %v275
      %v1671 = vpop.permute.xlu0 %1670
      %1673 = vset.pattern.permute.xlu0 6
      %1674 = vperm.xlu0 %1673, %v276
      %v1675 = vpop.permute.xlu0 %1674
      %1677 = vset.pattern.permute.xlu0 6
      %1678 = vperm.xlu0 %1677, %v277
      %v1679 = vpop.permute.xlu0 %1678
      %1681 = vset.pattern.permute.xlu0 6
      %1682 = vperm.xlu0 %1681, %v278
      %v1683 = vpop.permute.xlu0 %1682
      %1685 = vset.pattern.permute.xlu0 6
      %1686 = vperm.xlu0 %1685, %v279
      %v1687 = vpop.permute.xlu0 %1686
      %1689 = vset.pattern.permute.xlu0 6
      %1690 = vperm.xlu0 %1689, %v280
      %v1691 = vpop.permute.xlu0 %1690
      %1693 = vset.pattern.permute.xlu0 6
      %1694 = vperm.xlu0 %1693, %v281
      %v1695 = vpop.permute.xlu0 %1694
      %v1697 = vsel %vm1601, %v1635, 0.0
      %v1698 = vsel %vm1602, %v1635, 0.0
      %v1699 = vsel %vm1603, %v1639, 0.0
      %v1700 = vsel %vm1604, %v1639, 0.0
      %v1701 = vsel %vm1605, %v1643, 0.0
      %v1702 = vsel %vm1606, %v1643, 0.0
      %v1703 = vsel %vm1607, %v1647, 0.0
      %v1704 = vsel %vm1608, %v1647, 0.0
      %v1705 = vsel %vm1609, %v1651, 0.0
      %v1706 = vsel %vm1610, %v1651, 0.0
      %v1707 = vsel %vm1611, %v1655, 0.0
      %v1708 = vsel %vm1612, %v1655, 0.0
      %v1709 = vsel %vm1613, %v1659, 0.0
      %v1710 = vsel %vm1614, %v1659, 0.0
      %v1711 = vsel %vm1615, %v1663, 0.0
      %v1712 = vsel %vm1616, %v1663, 0.0
      %v1713 = vsel %vm1617, %v1667, 0.0
      %v1714 = vsel %vm1618, %v1667, 0.0
      %v1715 = vsel %vm1619, %v1671, 0.0
      %v1716 = vsel %vm1620, %v1671, 0.0
      %v1717 = vsel %vm1621, %v1675, 0.0
      %v1718 = vsel %vm1622, %v1675, 0.0
      %v1719 = vsel %vm1623, %v1679, 0.0
      %v1720 = vsel %vm1624, %v1679, 0.0
      %v1721 = vsel %vm1625, %v1683, 0.0
      %v1722 = vsel %vm1626, %v1683, 0.0
      %v1723 = vsel %vm1627, %v1687, 0.0
      %v1724 = vsel %vm1628, %v1687, 0.0
      %v1725 = vsel %vm1629, %v1691, 0.0
      %v1726 = vsel %vm1630, %v1691, 0.0
      %v1727 = vsel %vm1631, %v1695, 0.0
      %v1728 = vsel %vm1632, %v1695, 0.0
      %v1729 = vadd.f32 %v1521, %v1697
      %v1730 = vadd.f32 %v1522, %v1698
      %v1731 = vadd.f32 %v1523, %v1699
      %v1732 = vadd.f32 %v1524, %v1700
      %v1733 = vadd.f32 %v1525, %v1701
      %v1734 = vadd.f32 %v1526, %v1702
      %v1735 = vadd.f32 %v1527, %v1703
      %v1736 = vadd.f32 %v1528, %v1704
      %v1737 = vadd.f32 %v1529, %v1705
      %v1738 = vadd.f32 %v1530, %v1706
      %v1739 = vadd.f32 %v1531, %v1707
      %v1740 = vadd.f32 %v1532, %v1708
      %v1741 = vadd.f32 %v1533, %v1709
      %v1742 = vadd.f32 %v1534, %v1710
      %v1743 = vadd.f32 %v1535, %v1711
      %v1744 = vadd.f32 %v1536, %v1712
      %v1745 = vadd.f32 %v1537, %v1713
      %v1746 = vadd.f32 %v1538, %v1714
      %v1747 = vadd.f32 %v1539, %v1715
      %v1748 = vadd.f32 %v1540, %v1716
      %v1749 = vadd.f32 %v1541, %v1717
      %v1750 = vadd.f32 %v1542, %v1718
      %v1751 = vadd.f32 %v1543, %v1719
      %v1752 = vadd.f32 %v1544, %v1720
      %v1753 = vadd.f32 %v1545, %v1721
      %v1754 = vadd.f32 %v1546, %v1722
      %v1755 = vadd.f32 %v1547, %v1723
      %v1756 = vadd.f32 %v1548, %v1724
      %v1757 = vadd.f32 %v1549, %v1725
      %v1758 = vadd.f32 %v1550, %v1726
      %v1759 = vadd.f32 %v1551, %v1727
      %v1760 = vadd.f32 %v1552, %v1728
      %1761 = vset.pattern.permute.xlu0 7
      %1762 = vperm.xlu0 %1761, %v250
      %v1763 = vpop.permute.xlu0 %1762
      %1764 = vset.pattern.permute.xlu0 7
      %1765 = vperm.xlu0 %1764, %v251
      %v1766 = vpop.permute.xlu0 %1765
      %1767 = vset.pattern.permute.xlu0 7
      %1768 = vperm.xlu0 %1767, %v252
      %v1769 = vpop.permute.xlu0 %1768
      %1770 = vset.pattern.permute.xlu0 7
      %1771 = vperm.xlu0 %1770, %v253
      %v1772 = vpop.permute.xlu0 %1771
      %1773 = vset.pattern.permute.xlu0 7
      %1774 = vperm.xlu0 %1773, %v254
      %v1775 = vpop.permute.xlu0 %1774
      %1776 = vset.pattern.permute.xlu0 7
      %1777 = vperm.xlu0 %1776, %v255
      %v1778 = vpop.permute.xlu0 %1777
      %1779 = vset.pattern.permute.xlu0 7
      %1780 = vperm.xlu0 %1779, %v256
      %v1781 = vpop.permute.xlu0 %1780
      %1782 = vset.pattern.permute.xlu0 7
      %1783 = vperm.xlu0 %1782, %v257
      %v1784 = vpop.permute.xlu0 %1783
      %1785 = vset.pattern.permute.xlu0 7
      %1786 = vperm.xlu0 %1785, %v258
      %v1787 = vpop.permute.xlu0 %1786
      %1788 = vset.pattern.permute.xlu0 7
      %1789 = vperm.xlu0 %1788, %v259
      %v1790 = vpop.permute.xlu0 %1789
      %1791 = vset.pattern.permute.xlu0 7
      %1792 = vperm.xlu0 %1791, %v260
      %v1793 = vpop.permute.xlu0 %1792
      %1794 = vset.pattern.permute.xlu0 7
      %1795 = vperm.xlu0 %1794, %v261
      %v1796 = vpop.permute.xlu0 %1795
      %1797 = vset.pattern.permute.xlu0 7
      %1798 = vperm.xlu0 %1797, %v262
      %v1799 = vpop.permute.xlu0 %1798
      %1800 = vset.pattern.permute.xlu0 7
      %1801 = vperm.xlu0 %1800, %v263
      %v1802 = vpop.permute.xlu0 %1801
      %1803 = vset.pattern.permute.xlu0 7
      %1804 = vperm.xlu0 %1803, %v264
      %v1805 = vpop.permute.xlu0 %1804
      %1806 = vset.pattern.permute.xlu0 7
      %1807 = vperm.xlu0 %1806, %v265
      %v1808 = vpop.permute.xlu0 %1807
      %vm1809 = vcmp.eq.s32.totalorder %v1763, %v287
      %vm1810 = vcmp.eq.s32.totalorder %v1763, %v288
      %vm1811 = vcmp.eq.s32.totalorder %v1766, %v287
      %vm1812 = vcmp.eq.s32.totalorder %v1766, %v288
      %vm1813 = vcmp.eq.s32.totalorder %v1769, %v287
      %vm1814 = vcmp.eq.s32.totalorder %v1769, %v288
      %vm1815 = vcmp.eq.s32.totalorder %v1772, %v287
      %vm1816 = vcmp.eq.s32.totalorder %v1772, %v288
      %vm1817 = vcmp.eq.s32.totalorder %v1775, %v287
      %vm1818 = vcmp.eq.s32.totalorder %v1775, %v288
      %vm1819 = vcmp.eq.s32.totalorder %v1778, %v287
      %vm1820 = vcmp.eq.s32.totalorder %v1778, %v288
      %vm1821 = vcmp.eq.s32.totalorder %v1781, %v287
      %vm1822 = vcmp.eq.s32.totalorder %v1781, %v288
      %vm1823 = vcmp.eq.s32.totalorder %v1784, %v287
      %vm1824 = vcmp.eq.s32.totalorder %v1784, %v288
      %vm1825 = vcmp.eq.s32.totalorder %v1787, %v287
      %vm1826 = vcmp.eq.s32.totalorder %v1787, %v288
      %vm1827 = vcmp.eq.s32.totalorder %v1790, %v287
      %vm1828 = vcmp.eq.s32.totalorder %v1790, %v288
      %vm1829 = vcmp.eq.s32.totalorder %v1793, %v287
      %vm1830 = vcmp.eq.s32.totalorder %v1793, %v288
      %vm1831 = vcmp.eq.s32.totalorder %v1796, %v287
      %vm1832 = vcmp.eq.s32.totalorder %v1796, %v288
      %vm1833 = vcmp.eq.s32.totalorder %v1799, %v287
      %vm1834 = vcmp.eq.s32.totalorder %v1799, %v288
      %vm1835 = vcmp.eq.s32.totalorder %v1802, %v287
      %vm1836 = vcmp.eq.s32.totalorder %v1802, %v288
      %vm1837 = vcmp.eq.s32.totalorder %v1805, %v287
      %vm1838 = vcmp.eq.s32.totalorder %v1805, %v288
      %vm1839 = vcmp.eq.s32.totalorder %v1808, %v287
      %vm1840 = vcmp.eq.s32.totalorder %v1808, %v288
      %1841 = vset.pattern.permute.xlu0 7
      %1842 = vperm.xlu0 %1841, %v266
      %v1843 = vpop.permute.xlu0 %1842
      %1845 = vset.pattern.permute.xlu0 7
      %1846 = vperm.xlu0 %1845, %v267
      %v1847 = vpop.permute.xlu0 %1846
      %1849 = vset.pattern.permute.xlu0 7
      %1850 = vperm.xlu0 %1849, %v268
      %v1851 = vpop.permute.xlu0 %1850
      %1853 = vset.pattern.permute.xlu0 7
      %1854 = vperm.xlu0 %1853, %v269
      %v1855 = vpop.permute.xlu0 %1854
      %1857 = vset.pattern.permute.xlu0 7
      %1858 = vperm.xlu0 %1857, %v270
      %v1859 = vpop.permute.xlu0 %1858
      %1861 = vset.pattern.permute.xlu0 7
      %1862 = vperm.xlu0 %1861, %v271
      %v1863 = vpop.permute.xlu0 %1862
      %1865 = vset.pattern.permute.xlu0 7
      %1866 = vperm.xlu0 %1865, %v272
      %v1867 = vpop.permute.xlu0 %1866
      %1869 = vset.pattern.permute.xlu0 7
      %1870 = vperm.xlu0 %1869, %v273
      %v1871 = vpop.permute.xlu0 %1870
      %1873 = vset.pattern.permute.xlu0 7
      %1874 = vperm.xlu0 %1873, %v274
      %v1875 = vpop.permute.xlu0 %1874
      %1877 = vset.pattern.permute.xlu0 7
      %1878 = vperm.xlu0 %1877, %v275
      %v1879 = vpop.permute.xlu0 %1878
      %1881 = vset.pattern.permute.xlu0 7
      %1882 = vperm.xlu0 %1881, %v276
      %v1883 = vpop.permute.xlu0 %1882
      %1885 = vset.pattern.permute.xlu0 7
      %1886 = vperm.xlu0 %1885, %v277
      %v1887 = vpop.permute.xlu0 %1886
      %1889 = vset.pattern.permute.xlu0 7
      %1890 = vperm.xlu0 %1889, %v278
      %v1891 = vpop.permute.xlu0 %1890
      %1893 = vset.pattern.permute.xlu0 7
      %1894 = vperm.xlu0 %1893, %v279
      %v1895 = vpop.permute.xlu0 %1894
      %1897 = vset.pattern.permute.xlu0 7
      %1898 = vperm.xlu0 %1897, %v280
      %v1899 = vpop.permute.xlu0 %1898
      %1901 = vset.pattern.permute.xlu0 7
      %1902 = vperm.xlu0 %1901, %v281
      %v1903 = vpop.permute.xlu0 %1902
      %v1905 = vsel %vm1809, %v1843, 0.0
      %v1906 = vsel %vm1810, %v1843, 0.0
      %v1907 = vsel %vm1811, %v1847, 0.0
      %v1908 = vsel %vm1812, %v1847, 0.0
      %v1909 = vsel %vm1813, %v1851, 0.0
      %v1910 = vsel %vm1814, %v1851, 0.0
      %v1911 = vsel %vm1815, %v1855, 0.0
      %v1912 = vsel %vm1816, %v1855, 0.0
      %v1913 = vsel %vm1817, %v1859, 0.0
      %v1914 = vsel %vm1818, %v1859, 0.0
      %v1915 = vsel %vm1819, %v1863, 0.0
      %v1916 = vsel %vm1820, %v1863, 0.0
      %v1917 = vsel %vm1821, %v1867, 0.0
      %v1918 = vsel %vm1822, %v1867, 0.0
      %v1919 = vsel %vm1823, %v1871, 0.0
      %v1920 = vsel %vm1824, %v1871, 0.0
      %v1921 = vsel %vm1825, %v1875, 0.0
      %v1922 = vsel %vm1826, %v1875, 0.0
      %v1923 = vsel %vm1827, %v1879, 0.0
      %v1924 = vsel %vm1828, %v1879, 0.0
      %v1925 = vsel %vm1829, %v1883, 0.0
      %v1926 = vsel %vm1830, %v1883, 0.0
      %v1927 = vsel %vm1831, %v1887, 0.0
      %v1928 = vsel %vm1832, %v1887, 0.0
      %v1929 = vsel %vm1833, %v1891, 0.0
      %v1930 = vsel %vm1834, %v1891, 0.0
      %v1931 = vsel %vm1835, %v1895, 0.0
      %v1932 = vsel %vm1836, %v1895, 0.0
      %v1933 = vsel %vm1837, %v1899, 0.0
      %v1934 = vsel %vm1838, %v1899, 0.0
      %v1935 = vsel %vm1839, %v1903, 0.0
      %v1936 = vsel %vm1840, %v1903, 0.0
      %v1937 = vadd.f32 %v1729, %v1905
      %v1938 = vadd.f32 %v1730, %v1906
      %v1939 = vadd.f32 %v1731, %v1907
      %v1940 = vadd.f32 %v1732, %v1908
      %v1941 = vadd.f32 %v1733, %v1909
      %v1942 = vadd.f32 %v1734, %v1910
      %v1943 = vadd.f32 %v1735, %v1911
      %v1944 = vadd.f32 %v1736, %v1912
      %v1945 = vadd.f32 %v1737, %v1913
      %v1946 = vadd.f32 %v1738, %v1914
      %v1947 = vadd.f32 %v1739, %v1915
      %v1948 = vadd.f32 %v1740, %v1916
      %v1949 = vadd.f32 %v1741, %v1917
      %v1950 = vadd.f32 %v1742, %v1918
      %v1951 = vadd.f32 %v1743, %v1919
      %v1952 = vadd.f32 %v1744, %v1920
      %v1953 = vadd.f32 %v1745, %v1921
      %v1954 = vadd.f32 %v1746, %v1922
      %v1955 = vadd.f32 %v1747, %v1923
      %v1956 = vadd.f32 %v1748, %v1924
      %v1957 = vadd.f32 %v1749, %v1925
      %v1958 = vadd.f32 %v1750, %v1926
      %v1959 = vadd.f32 %v1751, %v1927
      %v1960 = vadd.f32 %v1752, %v1928
      %v1961 = vadd.f32 %v1753, %v1929
      %v1962 = vadd.f32 %v1754, %v1930
      %v1963 = vadd.f32 %v1755, %v1931
      %v1964 = vadd.f32 %v1756, %v1932
      %v1965 = vadd.f32 %v1757, %v1933
      %v1966 = vadd.f32 %v1758, %v1934
      %v1967 = vadd.f32 %v1759, %v1935
      %v1968 = vadd.f32 %v1760, %v1936
      %v1969 = vld [vmem:[#allocation2] sm:$0xff]
      %v1970 = vld [vmem:[#allocation2 + $0x8] sm:$0xff]
      %v1971 = vld [vmem:[#allocation2 + $0x10] sm:$0xff]
      %v1972 = vld [vmem:[#allocation2 + $0x18] sm:$0xff]
      %v1973 = vld [vmem:[#allocation2 + $0x20] sm:$0xff]
      %v1974 = vld [vmem:[#allocation2 + $0x28] sm:$0xff]
      %v1975 = vld [vmem:[#allocation2 + $0x30] sm:$0xff]
      %v1976 = vld [vmem:[#allocation2 + $0x38] sm:$0xff]
      %v1977 = vld [vmem:[#allocation2 + $0x40] sm:$0xff]
      %v1978 = vld [vmem:[#allocation2 + $0x48] sm:$0xff]
      %v1979 = vld [vmem:[#allocation2 + $0x50] sm:$0xff]
      %v1980 = vld [vmem:[#allocation2 + $0x58] sm:$0xff]
      %v1981 = vld [vmem:[#allocation2 + $0x60] sm:$0xff]
      %v1982 = vld [vmem:[#allocation2 + $0x68] sm:$0xff]
      %v1983 = vld [vmem:[#allocation2 + $0x70] sm:$0xff]
      %v1984 = vld [vmem:[#allocation2 + $0x78] sm:$0xff]
      %v1985 = vld [vmem:[%s222] sm:$0xff]
      %v1986 = vld [vmem:[%s222 + $0x8] sm:$0xff]
      %v1987 = vld [vmem:[%s222 + $0x10] sm:$0xff]
      %v1988 = vld [vmem:[%s222 + $0x18] sm:$0xff]
      %v1989 = vld [vmem:[%s222 + $0x20] sm:$0xff]
      %v1990 = vld [vmem:[%s222 + $0x28] sm:$0xff]
      %v1991 = vld [vmem:[%s222 + $0x30] sm:$0xff]
      %v1992 = vld [vmem:[%s222 + $0x38] sm:$0xff]
      %v1993 = vld [vmem:[%s222 + $0x40] sm:$0xff]
      %v1994 = vld [vmem:[%s222 + $0x48] sm:$0xff]
      %v1995 = vld [vmem:[%s222 + $0x50] sm:$0xff]
      %v1996 = vld [vmem:[%s222 + $0x58] sm:$0xff]
      %v1997 = vld [vmem:[%s222 + $0x60] sm:$0xff]
      %v1998 = vld [vmem:[%s222 + $0x68] sm:$0xff]
      %v1999 = vld [vmem:[%s222 + $0x70] sm:$0xff]
      %v2000 = vld [vmem:[%s222 + $0x78] sm:$0xff]
      %v2001 = vld [vmem:[%s222 + $0x80] sm:$0xff]
      %v2002 = vld [vmem:[%s222 + $0x88] sm:$0xff]
      %v2003 = vld [vmem:[%s222 + $0x90] sm:$0xff]
      %v2004 = vld [vmem:[%s222 + $0x98] sm:$0xff]
      %v2005 = vld [vmem:[%s222 + $0xa0] sm:$0xff]
      %v2006 = vld [vmem:[%s222 + $0xa8] sm:$0xff]
      %v2007 = vld [vmem:[%s222 + $0xb0] sm:$0xff]
      %v2008 = vld [vmem:[%s222 + $0xb8] sm:$0xff]
      %v2009 = vld [vmem:[%s222 + $0xc0] sm:$0xff]
      %v2010 = vld [vmem:[%s222 + $0xc8] sm:$0xff]
      %v2011 = vld [vmem:[%s222 + $0xd0] sm:$0xff]
      %v2012 = vld [vmem:[%s222 + $0xd8] sm:$0xff]
      %v2013 = vld [vmem:[%s222 + $0xe0] sm:$0xff]
      %v2014 = vld [vmem:[%s222 + $0xe8] sm:$0xff]
      %v2015 = vld [vmem:[%s222 + $0xf0] sm:$0xff]
      %v2016 = vld [vmem:[%s222 + $0xf8] sm:$0xff]
      %2017 = vmatprep.subr.mxu0 0.0
      %2018 = vmatpush1.msra.mxu0 %v2000
      %2019 = vmatprep.subr.mxu0 0.0
      %2020 = vmatpush1.msra.mxu0 %v1999
      %2021 = vmatprep.subr.mxu0 0.0
      %2022 = vmatpush1.msra.mxu0 %v1998
      %2023 = vmatprep.subr.mxu0 0.0
      %2024 = vmatpush1.msra.mxu0 %v1997
      %2025 = vmatprep.subr.mxu0 0.0
      %2026 = vmatpush1.msra.mxu0 %v1996
      %2027 = vmatprep.subr.mxu0 0.0
      %2028 = vmatpush1.msra.mxu0 %v1995
      %2029 = vmatprep.subr.mxu0 0.0
      %2030 = vmatpush1.msra.mxu0 %v1994
      %2031 = vmatprep.subr.mxu0 0.0
      %2032 = vmatpush1.msra.mxu0 %v1993
      %2033 = vmatprep.subr.mxu0 0.0
      %2034 = vmatpush1.msra.mxu0 %v1992
      %2035 = vmatprep.subr.mxu0 0.0
      %2036 = vmatpush1.msra.mxu0 %v1991
      %2037 = vmatprep.subr.mxu0 0.0
      %2038 = vmatpush1.msra.mxu0 %v1990
      %2039 = vmatprep.subr.mxu0 0.0
      %2040 = vmatpush1.msra.mxu0 %v1989
      %2041 = vmatprep.subr.mxu0 0.0
      %2042 = vmatpush1.msra.mxu0 %v1988
      %2043 = vmatprep.subr.mxu0 0.0
      %2044 = vmatpush1.msra.mxu0 %v1987
      %2045 = vmatprep.subr.mxu0 0.0
      %2046 = vmatpush1.msra.mxu0 %v1986
      %2047 = vmatprep.subr.mxu0 0.0
      %2048 = vmatpush1.msra.mxu0 %v1985
      %2049 = vmatprep.subr.mxu0 0.0
      %2050 = vmatpush2.msra.mxu0 %v2016
      %2051 = vmatprep.subr.mxu0 0.0
      %2052 = vmatpush2.msra.mxu0 %v2015
      %2053 = vmatprep.subr.mxu0 0.0
      %2054 = vmatpush2.msra.mxu0 %v2014
      %2055 = vmatprep.subr.mxu0 0.0
      %2056 = vmatpush2.msra.mxu0 %v2013
      %2057 = vmatprep.subr.mxu0 0.0
      %2058 = vmatpush2.msra.mxu0 %v2012
      %2059 = vmatprep.subr.mxu0 0.0
      %2060 = vmatpush2.msra.mxu0 %v2011
      %2061 = vmatprep.subr.mxu0 0.0
      %2062 = vmatpush2.msra.mxu0 %v2010
      %2063 = vmatprep.subr.mxu0 0.0
      %2064 = vmatpush2.msra.mxu0 %v2009
      %2065 = vmatprep.subr.mxu0 0.0
      %2066 = vmatpush2.msra.mxu0 %v2008
      %2067 = vmatprep.subr.mxu0 0.0
      %2068 = vmatpush2.msra.mxu0 %v2007
      %2069 = vmatprep.subr.mxu0 0.0
      %2070 = vmatpush2.msra.mxu0 %v2006
      %2071 = vmatprep.subr.mxu0 0.0
      %2072 = vmatpush2.msra.mxu0 %v2005
      %2073 = vmatprep.subr.mxu0 0.0
      %2074 = vmatpush2.msra.mxu0 %v2004
      %2075 = vmatprep.subr.mxu0 0.0
      %2076 = vmatpush2.msra.mxu0 %v2003
      %2077 = vmatprep.subr.mxu0 0.0
      %2078 = vmatpush2.msra.mxu0 %v2002
      %2079 = vmatprep.subr.mxu0 0.0
      %2080 = vmatpush2.msra.mxu0 %v2001
      %2081 = vmatprep.mubr.f32.mxu0 %v1938
      %2082 = vmatmul.mubr.f32.gmra.mxu0 %v1937
      %v2083 = vpop.f32.mrf.mxu0
      %v2084 = vadd.f32 0.0, %v2083
      %v2085 = vpop.f32.mrf.mxu0
      %2086 = vmatprep.mubr.f32.mxu0 %v1940
      %2087 = vmatmul.mubr.f32.gmra.mxu0 %v1939
      %v2088 = vpop.f32.mrf.mxu0
      %v2089 = vadd.f32 0.0, %v2088
      %v2090 = vpop.f32.mrf.mxu0
      %2091 = vmatprep.mubr.f32.mxu0 %v1942
      %2092 = vmatmul.mubr.f32.gmra.mxu0 %v1941
      %v2093 = vpop.f32.mrf.mxu0
      %v2094 = vadd.f32 0.0, %v2093
      %v2095 = vpop.f32.mrf.mxu0
      %2096 = vmatprep.mubr.f32.mxu0 %v1944
      %2097 = vmatmul.mubr.f32.gmra.mxu0 %v1943
      %v2098 = vpop.f32.mrf.mxu0
      %v2099 = vadd.f32 0.0, %v2098
      %v2100 = vpop.f32.mrf.mxu0
      %2101 = vmatprep.mubr.f32.mxu0 %v1946
      %2102 = vmatmul.mubr.f32.gmra.mxu0 %v1945
      %v2103 = vpop.f32.mrf.mxu0
      %v2104 = vadd.f32 0.0, %v2103
      %v2105 = vpop.f32.mrf.mxu0
      %2106 = vmatprep.mubr.f32.mxu0 %v1948
      %2107 = vmatmul.mubr.f32.gmra.mxu0 %v1947
      %v2108 = vpop.f32.mrf.mxu0
      %v2109 = vadd.f32 0.0, %v2108
      %v2110 = vpop.f32.mrf.mxu0
      %2111 = vmatprep.mubr.f32.mxu0 %v1950
      %2112 = vmatmul.mubr.f32.gmra.mxu0 %v1949
      %v2113 = vpop.f32.mrf.mxu0
      %v2114 = vadd.f32 0.0, %v2113
      %v2115 = vpop.f32.mrf.mxu0
      %2116 = vmatprep.mubr.f32.mxu0 %v1952
      %2117 = vmatmul.mubr.f32.gmra.mxu0 %v1951
      %v2118 = vpop.f32.mrf.mxu0
      %v2119 = vadd.f32 0.0, %v2118
      %v2120 = vpop.f32.mrf.mxu0
      %2121 = vmatprep.mubr.f32.mxu0 %v1954
      %2122 = vmatmul.mubr.f32.gmra.mxu0 %v1953
      %v2123 = vpop.f32.mrf.mxu0
      %v2124 = vadd.f32 0.0, %v2123
      %v2125 = vpop.f32.mrf.mxu0
      %2126 = vmatprep.mubr.f32.mxu0 %v1956
      %2127 = vmatmul.mubr.f32.gmra.mxu0 %v1955
      %v2128 = vpop.f32.mrf.mxu0
      %v2129 = vadd.f32 0.0, %v2128
      %v2130 = vpop.f32.mrf.mxu0
      %2131 = vmatprep.mubr.f32.mxu0 %v1958
      %2132 = vmatmul.mubr.f32.gmra.mxu0 %v1957
      %v2133 = vpop.f32.mrf.mxu0
      %v2134 = vadd.f32 0.0, %v2133
      %v2135 = vpop.f32.mrf.mxu0
      %2136 = vmatprep.mubr.f32.mxu0 %v1960
      %2137 = vmatmul.mubr.f32.gmra.mxu0 %v1959
      %v2138 = vpop.f32.mrf.mxu0
      %v2139 = vadd.f32 0.0, %v2138
      %v2140 = vpop.f32.mrf.mxu0
      %2141 = vmatprep.mubr.f32.mxu0 %v1962
      %2142 = vmatmul.mubr.f32.gmra.mxu0 %v1961
      %v2143 = vpop.f32.mrf.mxu0
      %v2144 = vadd.f32 0.0, %v2143
      %v2145 = vpop.f32.mrf.mxu0
      %2146 = vmatprep.mubr.f32.mxu0 %v1964
      %2147 = vmatmul.mubr.f32.gmra.mxu0 %v1963
      %v2148 = vpop.f32.mrf.mxu0
      %v2149 = vadd.f32 0.0, %v2148
      %v2150 = vpop.f32.mrf.mxu0
      %2151 = vmatprep.mubr.f32.mxu0 %v1966
      %2152 = vmatmul.mubr.f32.gmra.mxu0 %v1965
      %v2153 = vpop.f32.mrf.mxu0
      %v2154 = vadd.f32 0.0, %v2153
      %v2155 = vpop.f32.mrf.mxu0
      %2156 = vmatprep.mubr.f32.mxu0 %v1968
      %2157 = vmatmul.mubr.f32.gmra.mxu0 %v1967
      %v2158 = vpop.f32.mrf.mxu0
      %v2159 = vadd.f32 0.0, %v2158
      %v2160 = vpop.f32.mrf.mxu0
      %2161 = vdwg.mxu0
      %v2162 = vadd.f32 %v1969, %v2084
      %v2163 = vadd.f32 %v1970, %v2089
      %v2164 = vadd.f32 %v1971, %v2094
      %v2165 = vadd.f32 %v1972, %v2099
      %v2166 = vadd.f32 %v1973, %v2104
      %v2167 = vadd.f32 %v1974, %v2109
      %v2168 = vadd.f32 %v1975, %v2114
      %v2169 = vadd.f32 %v1976, %v2119
      %v2170 = vadd.f32 %v1977, %v2124
      %v2171 = vadd.f32 %v1978, %v2129
      %v2172 = vadd.f32 %v1979, %v2134
      %v2173 = vadd.f32 %v1980, %v2139
      %v2174 = vadd.f32 %v1981, %v2144
      %v2175 = vadd.f32 %v1982, %v2149
      %v2176 = vadd.f32 %v1983, %v2154
      %v2177 = vadd.f32 %v1984, %v2159
      %2178 = vst [vmem:[#allocation2] sm:$0xff] %v2162
      %2179 = vst [vmem:[#allocation2 + $0x8] sm:$0xff] %v2163
      %2180 = vst [vmem:[#allocation2 + $0x10] sm:$0xff] %v2164
      %2181 = vst [vmem:[#allocation2 + $0x18] sm:$0xff] %v2165
      %2182 = vst [vmem:[#allocation2 + $0x20] sm:$0xff] %v2166
      %2183 = vst [vmem:[#allocation2 + $0x28] sm:$0xff] %v2167
      %2184 = vst [vmem:[#allocation2 + $0x30] sm:$0xff] %v2168
      %2185 = vst [vmem:[#allocation2 + $0x38] sm:$0xff] %v2169
      %2186 = vst [vmem:[#allocation2 + $0x40] sm:$0xff] %v2170
      %2187 = vst [vmem:[#allocation2 + $0x48] sm:$0xff] %v2171
      %2188 = vst [vmem:[#allocation2 + $0x50] sm:$0xff] %v2172
      %2189 = vst [vmem:[#allocation2 + $0x58] sm:$0xff] %v2173
      %2190 = vst [vmem:[#allocation2 + $0x60] sm:$0xff] %v2174
      %2191 = vst [vmem:[#allocation2 + $0x68] sm:$0xff] %v2175
      %2192 = vst [vmem:[#allocation2 + $0x70] sm:$0xff] %v2176
      %2193 = vst [vmem:[#allocation2 + $0x78] sm:$0xff] %v2177
      %p2194 = scmp.eq.s32.totalorder %s19, 1
      // Predicated region
      $region37: #{octree_trilinear.1} parent=31 // pred_check
        %p2195 = pneg %p2194
      $region38: #{octree_trilinear.1} parent=31 // pred_check_branch
        %2197 = sbr.rel (%p2195) target = $region40
      $region39: #{octree_trilinear.1} parent=31 // pred_region
        %vm2198 = vcmask 64512
        %v2199 = vsel %vm2198, %v266, 0.0
        %2200 = vadd.xlane.f32.xlu0 %v2199
        %v2201 = vpop.xlane.xlu0 %2200
        %v2202 = vsel %vm2198, %v267, 0.0
        %2203 = vadd.xlane.f32.xlu0 %v2202
        %v2204 = vpop.xlane.xlu0 %2203
        %v2205 = vsel %vm2198, %v268, 0.0
        %2206 = vadd.xlane.f32.xlu0 %v2205
        %v2207 = vpop.xlane.xlu0 %2206
        %v2208 = vsel %vm2198, %v269, 0.0
        %2209 = vadd.xlane.f32.xlu0 %v2208
        %v2210 = vpop.xlane.xlu0 %2209
        %v2211 = vsel %vm2198, %v270, 0.0
        %2212 = vadd.xlane.f32.xlu0 %v2211
        %v2213 = vpop.xlane.xlu0 %2212
        %v2214 = vsel %vm2198, %v271, 0.0
        %2215 = vadd.xlane.f32.xlu0 %v2214
        %v2216 = vpop.xlane.xlu0 %2215
        %v2217 = vsel %vm2198, %v272, 0.0
        %2218 = vadd.xlane.f32.xlu0 %v2217
        %v2219 = vpop.xlane.xlu0 %2218
        %v2220 = vsel %vm2198, %v273, 0.0
        %2221 = vadd.xlane.f32.xlu0 %v2220
        %v2222 = vpop.xlane.xlu0 %2221
        %v2223 = vsel %vm2198, %v274, 0.0
        %2224 = vadd.xlane.f32.xlu0 %v2223
        %v2225 = vpop.xlane.xlu0 %2224
        %v2226 = vsel %vm2198, %v275, 0.0
        %2227 = vadd.xlane.f32.xlu0 %v2226
        %v2228 = vpop.xlane.xlu0 %2227
        %v2229 = vsel %vm2198, %v276, 0.0
        %2230 = vadd.xlane.f32.xlu0 %v2229
        %v2231 = vpop.xlane.xlu0 %2230
        %v2232 = vsel %vm2198, %v277, 0.0
        %2233 = vadd.xlane.f32.xlu0 %v2232
        %v2234 = vpop.xlane.xlu0 %2233
        %v2235 = vsel %vm2198, %v278, 0.0
        %2236 = vadd.xlane.f32.xlu0 %v2235
        %v2237 = vpop.xlane.xlu0 %2236
        %v2238 = vsel %vm2198, %v279, 0.0
        %2239 = vadd.xlane.f32.xlu0 %v2238
        %v2240 = vpop.xlane.xlu0 %2239
        %v2241 = vsel %vm2198, %v280, 0.0
        %2242 = vadd.xlane.f32.xlu0 %v2241
        %v2243 = vpop.xlane.xlu0 %2242
        %v2244 = vsel %vm2198, %v281, 0.0
        %2245 = vadd.xlane.f32.xlu0 %v2244
        %v2246 = vpop.xlane.xlu0 %2245
        %v2247 = vld [vmem:[#allocation2] sm:$0xff]
        %v2248 = vld [vmem:[#allocation2 + $0x8] sm:$0xff]
        %v2249 = vld [vmem:[#allocation2 + $0x10] sm:$0xff]
        %v2250 = vld [vmem:[#allocation2 + $0x18] sm:$0xff]
        %v2251 = vld [vmem:[#allocation2 + $0x20] sm:$0xff]
        %v2252 = vld [vmem:[#allocation2 + $0x28] sm:$0xff]
        %v2253 = vld [vmem:[#allocation2 + $0x30] sm:$0xff]
        %v2254 = vld [vmem:[#allocation2 + $0x38] sm:$0xff]
        %v2255 = vld [vmem:[#allocation2 + $0x40] sm:$0xff]
        %v2256 = vld [vmem:[#allocation2 + $0x48] sm:$0xff]
        %v2257 = vld [vmem:[#allocation2 + $0x50] sm:$0xff]
        %v2258 = vld [vmem:[#allocation2 + $0x58] sm:$0xff]
        %v2259 = vld [vmem:[#allocation2 + $0x60] sm:$0xff]
        %v2260 = vld [vmem:[#allocation2 + $0x68] sm:$0xff]
        %v2261 = vld [vmem:[#allocation2 + $0x70] sm:$0xff]
        %v2262 = vld [vmem:[#allocation2 + $0x78] sm:$0xff]
        %v2263 = vadd.f32 %v2201, 1e-10
        %v2264 = vadd.f32 %v2204, 1e-10
        %v2265 = vadd.f32 %v2207, 1e-10
        %v2266 = vadd.f32 %v2210, 1e-10
        %v2267 = vadd.f32 %v2213, 1e-10
        %v2268 = vadd.f32 %v2216, 1e-10
        %v2269 = vadd.f32 %v2219, 1e-10
        %v2270 = vadd.f32 %v2222, 1e-10
        %v2271 = vadd.f32 %v2225, 1e-10
        %v2272 = vadd.f32 %v2228, 1e-10
        %v2273 = vadd.f32 %v2231, 1e-10
        %v2274 = vadd.f32 %v2234, 1e-10
        %v2275 = vadd.f32 %v2237, 1e-10
        %v2276 = vadd.f32 %v2240, 1e-10
        %v2277 = vadd.f32 %v2243, 1e-10
        %v2278 = vadd.f32 %v2246, 1e-10
        %v2279 = vrcp.pop %v2263
        %v2280 = vmul.f32 %v2247, %v2279
        %v2281 = vrcp.pop %v2264
        %v2282 = vmul.f32 %v2248, %v2281
        %v2283 = vrcp.pop %v2265
        %v2284 = vmul.f32 %v2249, %v2283
        %v2285 = vrcp.pop %v2266
        %v2286 = vmul.f32 %v2250, %v2285
        %v2287 = vrcp.pop %v2267
        %v2288 = vmul.f32 %v2251, %v2287
        %v2289 = vrcp.pop %v2268
        %v2290 = vmul.f32 %v2252, %v2289
        %v2291 = vrcp.pop %v2269
        %v2292 = vmul.f32 %v2253, %v2291
        %v2293 = vrcp.pop %v2270
        %v2294 = vmul.f32 %v2254, %v2293
        %v2295 = vrcp.pop %v2271
        %v2296 = vmul.f32 %v2255, %v2295
        %v2297 = vrcp.pop %v2272
        %v2298 = vmul.f32 %v2256, %v2297
        %v2299 = vrcp.pop %v2273
        %v2300 = vmul.f32 %v2257, %v2299
        %v2301 = vrcp.pop %v2274
        %v2302 = vmul.f32 %v2258, %v2301
        %v2303 = vrcp.pop %v2275
        %v2304 = vmul.f32 %v2259, %v2303
        %v2305 = vrcp.pop %v2276
        %v2306 = vmul.f32 %v2260, %v2305
        %v2307 = vrcp.pop %v2277
        %v2308 = vmul.f32 %v2261, %v2307
        %v2309 = vrcp.pop %v2278
        %v2310 = vmul.f32 %v2262, %v2309
        %2311 = vst [vmem:[%s228] sm:$0xff] %v2280
        %2312 = vst [vmem:[%s228 + $0x8] sm:$0xff] %v2282
        %2313 = vst [vmem:[%s228 + $0x10] sm:$0xff] %v2284
        %2314 = vst [vmem:[%s228 + $0x18] sm:$0xff] %v2286
        %2315 = vst [vmem:[%s228 + $0x20] sm:$0xff] %v2288
        %2316 = vst [vmem:[%s228 + $0x28] sm:$0xff] %v2290
        %2317 = vst [vmem:[%s228 + $0x30] sm:$0xff] %v2292
        %2318 = vst [vmem:[%s228 + $0x38] sm:$0xff] %v2294
        %2319 = vst [vmem:[%s228 + $0x40] sm:$0xff] %v2296
        %2320 = vst [vmem:[%s228 + $0x48] sm:$0xff] %v2298
        %2321 = vst [vmem:[%s228 + $0x50] sm:$0xff] %v2300
        %2322 = vst [vmem:[%s228 + $0x58] sm:$0xff] %v2302
        %2323 = vst [vmem:[%s228 + $0x60] sm:$0xff] %v2304
        %2324 = vst [vmem:[%s228 + $0x68] sm:$0xff] %v2306
        %2325 = vst [vmem:[%s228 + $0x70] sm:$0xff] %v2308
        %2326 = vst [vmem:[%s228 + $0x78] sm:$0xff] %v2310
      $region40: #{octree_trilinear.1} parent=31 // pred_fallthru
        _
      %s2327 = smul.u32 16, %s18
      %p2328 = scmp.lt.s32.totalorder %s2327, 15
      %s2329 = scalar_select %p2328, %s2327, 15
      %s2330 = smul.addr %s2329, 8
      %s2331 = scalar_lea.vmem %s3, %s2330
      // Predicated region
      $region41: #{octree_trilinear.1} parent=31 // pred_check
        %p2332 = pneg %p122
      $region42: #{octree_trilinear.1} parent=31 // pred_check_branch
        %2334 = sbr.rel (%p2332) target = $region44
      $region43: #{octree_trilinear.1} parent=31 // pred_region
        %s2335 = smul.u32 16, %s18
      $region44: #{octree_trilinear.1} parent=31 // pred_fallthru
        _
      // Predicated region
      $region45: #{octree_trilinear.1} parent=31 // pred_check
        %p2336 = pneg %p122
      $region46: #{octree_trilinear.1} parent=31 // pred_check_branch
        %2338 = sbr.rel (%p2336) target = $region48
      $region47: #{octree_trilinear.1} parent=31 // pred_region
        %s2339 = smul.u32 16, %s18
        %p2340 = scmp.lt.s32.totalorder %s2339, 15
        %s2341 = scalar_select %p2340, %s2339, 15
        %s2342 = smul.addr %s2341, 8
        %s2343 = scalar_lea.vmem %s3, %s2342
      $region48: #{octree_trilinear.1} parent=31 // pred_fallthru
        _
    $region32: #{octree_trilinear.1} parent=5 // pred_fallthru
      _
    %p2344 = scmp.le.s32.totalorder 2, %s9
    // Predicated region
    $region49: #{octree_trilinear.1} parent=5 // pred_check
      %p2345 = pneg %p2344
    $region50: #{octree_trilinear.1} parent=5 // pred_check_branch
      %2347 = sbr.rel (%p2345) target = $region52
    $region51: #{octree_trilinear.1} parent=5 // pred_region
      %s2348 = ssub.s32 %s9, 2
    $region52: #{octree_trilinear.1} parent=5 // pred_fallthru
      _
  $region6: #{octree_trilinear.1} parent=0 // loop_footer
    %s13 = sadd.s32 1, %s9
  $region7: #{octree_trilinear.1} parent=0 // loop_footer_branch
    %8 = sbr.rel target = $region3
  $region8: #{octree_trilinear.1} parent=0 // loop_exit
    _

</llo_original>
